<compile_context>
chip_gen: v5e
topology: v5e:2x2
jax: 0.10.0
libtpu: 0.0.40
codegen_flags: <defaults>
</compile_context>

<pallas_src>
import functools
import math

import jax
import jax.numpy as jnp
from jax.experimental import pallas as pl
from jax.experimental.pallas import tpu as pltpu


def _upsample_kernel(xp_ref, w_ref, b_ref, out_ref, *, tile_h: int, W: int, C: int):
    # xp_ref : (H+2, W+2, C)    zero-padded NHWC image (VMEM-resident across row tiles)
    # w_ref  : (9*C, 4*C)       im2col-repacked ConvTranspose2d weight (grid invariant)
    # b_ref  : (1, 4*C)         bias tiled over the 4 output parities (grid invariant)
    # out_ref: (tile_h*W, 4*C)  rows = (y, x) within this row tile, cols = (py, px, c_out)
    r = pl.program_id(1)
    row0 = pl.multiple_of(r * tile_h, tile_h)

    taps = []
    for dy in range(3):
        for dx in range(3):
            taps.append(xp_ref[pl.ds(row0 + dy, tile_h), pl.ds(dx, W), :])  # (tile_h, W, C)
    patch = jnp.concatenate(taps, axis=-1).reshape(tile_h * W, 9 * C)

    acc = jnp.dot(patch, w_ref[...], preferred_element_type=jnp.float32)
    out_ref[...] = (acc + b_ref[...]).astype(out_ref.dtype)


def _repack_weight(weight, C):
    """(Cin, Cout, 4, 4) PyTorch ConvTranspose2d weight -> (9*C, 4*C) im2col weight.

    Row block (dy, dx) / col block (py, px) holds W[:, :, ky, kx] with
    ky = py + 3 - 2*dy, kx = px + 3 - 2*dx (zero when outside the 4x4 kernel range).
    """
    zero = jnp.zeros((C, C), weight.dtype)
    rows = []
    for dy in range(3):
        for dx in range(3):
            cols = []
            for py in range(2):
                for px in range(2):
                    ky = py + 3 - 2 * dy
                    kx = px + 3 - 2 * dx
                    if 0 <= ky < 4 and 0 <= kx < 4:
                        cols.append(weight[:, :, ky, kx])              # (Cin, Cout)
                    else:
                        cols.append(zero)
            rows.append(jnp.concatenate(cols, axis=1))                 # (C, 4C)
    return jnp.concatenate(rows, axis=0)                               # (9C, 4C)


def _pick_tile_h(H, W, C, budget_bytes=6 << 20):
    """Largest divisor of H whose per-step patch + output block fit the VMEM budget."""
    valid = [t for t in range(1, H + 1)
             if H % t == 0 and (t == H or (t * W) % 8 == 0)]
    fitting = [t for t in valid
               if t * W * (9 * C + 3 * 4 * C) * 4 <= budget_bytes]
    return max(fitting) if fitting else min(valid)


@jax.jit
def upsample(x, weight, bias, cond=None):
    """x: (B, C, H, W) f32, weight: (C, C, 4, 4), bias: (C,) -> (B, C, 2H, 2W)."""
    del cond  # unused, as in the reference module
    B, C, H, W = x.shape
    assert weight.shape == (C, C, 4, 4) and bias.shape == (C,)

    # --- wrapper-side layout plumbing (fused by XLA, outside the kernel) --------------
    xp = jnp.pad(jnp.transpose(x, (0, 2, 3, 1)).astype(jnp.float32),
                 ((0, 0), (1, 1), (1, 1), (0, 0)))                     # (B, H+2, W+2, C)
    w_big = _repack_weight(weight.astype(jnp.float32), C)              # (9C, 4C)
    b_big = jnp.tile(bias.astype(jnp.float32), 4).reshape(1, 4 * C)    # (1, 4C)

    tile_h = _pick_tile_h(H, W, C)
    n_row_tiles = H // tile_h
    kernel = functools.partial(_upsample_kernel, tile_h=tile_h, W=W, C=C)

    flops = 2 * B * H * W * (9 * C) * (4 * C)
    bytes_accessed = 4 * (xp.size + w_big.size + b_big.size + B * H * W * 4 * C)

    out_flat = pl.pallas_call(
        kernel,
        out_shape=jax.ShapeDtypeStruct((B, H * W, 4 * C), jnp.float32),
        grid=(B, n_row_tiles),
        in_specs=[
            pl.BlockSpec((None, H + 2, W + 2, C), lambda b, r: (b, 0, 0, 0)),
            pl.BlockSpec((9 * C, 4 * C), lambda b, r: (0, 0)),
            pl.BlockSpec((1, 4 * C), lambda b, r: (0, 0)),
        ],
        out_specs=pl.BlockSpec((None, tile_h * W, 4 * C), lambda b, r: (b, r, 0)),
        compiler_params=pltpu.CompilerParams(
            dimension_semantics=("parallel", "arbitrary")),
        cost_estimate=pl.CostEstimate(flops=flops, transcendentals=0,
                                      bytes_accessed=bytes_accessed),
    )(xp, w_big, b_big)

    # --- wrapper-side parity interleave back to NCHW -----------------------------------
    out = out_flat.reshape(B, H, W, 2, 2, C)          # (b, y, x, py, px, co)
    out = jnp.transpose(out, (0, 5, 1, 3, 2, 4))      # (b, co, y, py, x, px)
    return out.reshape(B, C, 2 * H, 2 * W)


def reference_upsample(x, weight, bias):
    """Pure-JAX transposed conv matching nn.ConvTranspose2d(C, C, 4, 2, 1)."""
    B, Cin, H, W = x.shape
    Cout = weight.shape[1]
    full = jnp.zeros((B, Cout, 2 * H + 2, 2 * W + 2), jnp.float32)
    for ky in range(4):
        for kx in range(4):
            contrib = jnp.einsum('bchw,cd->bdhw', x, weight[:, :, ky, kx])
            full = full.at[:, :, ky:ky + 2 * H:2, kx:kx + 2 * W:2].add(contrib)
    out = full[:, :, 1:1 + 2 * H, 1:1 + 2 * W]
    return out + bias[None, :, None, None]


if __name__ == "__main__":
    B, C, H, W = 2, 4, 16, 16

    key = jax.random.PRNGKey(0)
    kx, kw, kb, kc = jax.random.split(key, 4)

    # Round inputs/params to the bf16 grid (kept as f32) so the XLA reference (default
    # matmul precision) and the MXU kernel agree up to f32 accumulation order.
    bound = 1.0 / math.sqrt(C * 4 * 4)
    x = jax.random.normal(kx, (B, C, H, W), jnp.float32).astype(jnp.bfloat16).astype(jnp.float32)
    weight = (jax.random.uniform(kw, (C, C, 4, 4), jnp.float32, -bound, bound)
              .astype(jnp.bfloat16).astype(jnp.float32))
    bias = (jax.random.uniform(kb, (C,), jnp.float32, -bound, bound)
            .astype(jnp.bfloat16).astype(jnp.float32))
    cond = jax.random.normal(kc, (B, 32), jnp.float32)   # ignored by the module

    out = upsample(x, weight, bias, cond)
    out = jax.block_until_ready(out)
    assert out.shape == (B, C, 2 * H, 2 * W), out.shape

    ref = reference_upsample(x, weight, bias)
    assert jnp.allclose(out, ref, atol=1e-4, rtol=1e-4), "mismatch vs reference"

    print("KERNEL_OK")
</pallas_src>

<mosaic_0001>
module attributes {stable_mosaic.version = 11 : i64} {
  func.func @_upsample_kernel(%arg0: i32, %arg1: i32, %arg2: memref<1x18x18x4xf32, #tpu.memory_space<vmem>>, %arg3: memref<36x16xf32, #tpu.memory_space<vmem>>, %arg4: memref<1x16xf32, #tpu.memory_space<vmem>>, %arg5: memref<1x256x16xf32, #tpu.memory_space<vmem>>) attributes {dimension_semantics = [#tpu.dimension_semantics<parallel>, #tpu.dimension_semantics<arbitrary>], iteration_bounds = array<i64: 2, 1>, scalar_prefetch = 0 : i64, scratch_operands = 0 : i64, tpu.core_type = #tpu.core_type<tc>, window_params = [{transform_indices = @transform_0, window_bounds = array<i64: 1, 18, 18, 4>}, {pipeline_mode = #tpu.pipeline_mode<synchronous>, transform_indices = @transform_1, window_bounds = array<i64: 36, 16>}, {pipeline_mode = #tpu.pipeline_mode<synchronous>, transform_indices = @transform_2, window_bounds = array<i64: 1, 16>}, {transform_indices = @transform_3, window_bounds = array<i64: 1, 256, 16>}]} {
    %c16_i32 = arith.constant 16 : i32
    %0 = arith.muli %arg1, %c16_i32 : i32
    %1 = tpu.assume_multiple %0, 16 : i32
    %c0_i32 = arith.constant 0 : i32
    %2 = arith.addi %1, %c0_i32 : i32
    %c0 = arith.constant 0 : index
    %3 = arith.index_cast %2 : i32 to index
    %c0_0 = arith.constant 0 : index
    %c0_1 = arith.constant 0 : index
    %4 = vector.load %arg2[%c0, %3, %c0_0, %c0_1] : memref<1x18x18x4xf32, #tpu.memory_space<vmem>>, vector<1x16x16x4xf32>
    %5 = vector.shape_cast %4 : vector<1x16x16x4xf32> to vector<16x16x4xf32>
    %c0_i32_2 = arith.constant 0 : i32
    %6 = arith.addi %1, %c0_i32_2 : i32
    %c0_3 = arith.constant 0 : index
    %7 = arith.index_cast %6 : i32 to index
    %c1 = arith.constant 1 : index
    %c0_4 = arith.constant 0 : index
    %8 = vector.load %arg2[%c0_3, %7, %c1, %c0_4] : memref<1x18x18x4xf32, #tpu.memory_space<vmem>>, vector<1x16x16x4xf32>
    %9 = vector.shape_cast %8 : vector<1x16x16x4xf32> to vector<16x16x4xf32>
    %c0_i32_5 = arith.constant 0 : i32
    %10 = arith.addi %1, %c0_i32_5 : i32
    %c0_6 = arith.constant 0 : index
    %11 = arith.index_cast %10 : i32 to index
    %c2 = arith.constant 2 : index
    %c0_7 = arith.constant 0 : index
    %12 = vector.load %arg2[%c0_6, %11, %c2, %c0_7] : memref<1x18x18x4xf32, #tpu.memory_space<vmem>>, vector<1x16x16x4xf32>
    %13 = vector.shape_cast %12 : vector<1x16x16x4xf32> to vector<16x16x4xf32>
    %c1_i32 = arith.constant 1 : i32
    %14 = arith.addi %1, %c1_i32 : i32
    %c0_8 = arith.constant 0 : index
    %15 = arith.index_cast %14 : i32 to index
    %c0_9 = arith.constant 0 : index
    %c0_10 = arith.constant 0 : index
    %16 = vector.load %arg2[%c0_8, %15, %c0_9, %c0_10] : memref<1x18x18x4xf32, #tpu.memory_space<vmem>>, vector<1x16x16x4xf32>
    %17 = vector.shape_cast %16 : vector<1x16x16x4xf32> to vector<16x16x4xf32>
    %c1_i32_11 = arith.constant 1 : i32
    %18 = arith.addi %1, %c1_i32_11 : i32
    %c0_12 = arith.constant 0 : index
    %19 = arith.index_cast %18 : i32 to index
    %c1_13 = arith.constant 1 : index
    %c0_14 = arith.constant 0 : index
    %20 = vector.load %arg2[%c0_12, %19, %c1_13, %c0_14] : memref<1x18x18x4xf32, #tpu.memory_space<vmem>>, vector<1x16x16x4xf32>
    %21 = vector.shape_cast %20 : vector<1x16x16x4xf32> to vector<16x16x4xf32>
    %c1_i32_15 = arith.constant 1 : i32
    %22 = arith.addi %1, %c1_i32_15 : i32
    %c0_16 = arith.constant 0 : index
    %23 = arith.index_cast %22 : i32 to index
    %c2_17 = arith.constant 2 : index
    %c0_18 = arith.constant 0 : index
    %24 = vector.load %arg2[%c0_16, %23, %c2_17, %c0_18] : memref<1x18x18x4xf32, #tpu.memory_space<vmem>>, vector<1x16x16x4xf32>
    %25 = vector.shape_cast %24 : vector<1x16x16x4xf32> to vector<16x16x4xf32>
    %c2_i32 = arith.constant 2 : i32
    %26 = arith.addi %1, %c2_i32 : i32
    %c0_19 = arith.constant 0 : index
    %27 = arith.index_cast %26 : i32 to index
    %c0_20 = arith.constant 0 : index
    %c0_21 = arith.constant 0 : index
    %28 = vector.load %arg2[%c0_19, %27, %c0_20, %c0_21] : memref<1x18x18x4xf32, #tpu.memory_space<vmem>>, vector<1x16x16x4xf32>
    %29 = vector.shape_cast %28 : vector<1x16x16x4xf32> to vector<16x16x4xf32>
    %c2_i32_22 = arith.constant 2 : i32
    %30 = arith.addi %1, %c2_i32_22 : i32
    %c0_23 = arith.constant 0 : index
    %31 = arith.index_cast %30 : i32 to index
    %c1_24 = arith.constant 1 : index
    %c0_25 = arith.constant 0 : index
    %32 = vector.load %arg2[%c0_23, %31, %c1_24, %c0_25] : memref<1x18x18x4xf32, #tpu.memory_space<vmem>>, vector<1x16x16x4xf32>
    %33 = vector.shape_cast %32 : vector<1x16x16x4xf32> to vector<16x16x4xf32>
    %c2_i32_26 = arith.constant 2 : i32
    %34 = arith.addi %1, %c2_i32_26 : i32
    %c0_27 = arith.constant 0 : index
    %35 = arith.index_cast %34 : i32 to index
    %c2_28 = arith.constant 2 : index
    %c0_29 = arith.constant 0 : index
    %36 = vector.load %arg2[%c0_27, %35, %c2_28, %c0_29] : memref<1x18x18x4xf32, #tpu.memory_space<vmem>>, vector<1x16x16x4xf32>
    %37 = vector.shape_cast %36 : vector<1x16x16x4xf32> to vector<16x16x4xf32>
    %38 = tpu.concatenate %5, %9, %13, %17, %21, %25, %29, %33, %37 in 2 : vector<16x16x4xf32>, vector<16x16x4xf32>, vector<16x16x4xf32>, vector<16x16x4xf32>, vector<16x16x4xf32>, vector<16x16x4xf32>, vector<16x16x4xf32>, vector<16x16x4xf32>, vector<16x16x4xf32> -> vector<16x16x36xf32>
    %39 = vector.shape_cast %38 : vector<16x16x36xf32> to vector<256x36xf32>
    %c0_30 = arith.constant 0 : index
    %c0_31 = arith.constant 0 : index
    %40 = vector.load %arg3[%c0_30, %c0_31] : memref<36x16xf32, #tpu.memory_space<vmem>>, vector<36x16xf32>
    %cst = arith.constant dense<0.000000e+00> : vector<256x16xf32>
    %41 = tpu.matmul %39, %40, %cst {dimension_numbers = #tpu.dot_dimension_numbers<[1], [0], [0], [1], [0, 0, 1, 1], [], []>} : vector<256x36xf32>, vector<36x16xf32>, vector<256x16xf32> -> vector<256x16xf32>
    %c0_32 = arith.constant 0 : index
    %c0_33 = arith.constant 0 : index
    %42 = vector.load %arg4[%c0_32, %c0_33] : memref<1x16xf32, #tpu.memory_space<vmem>>, vector<1x16xf32>
    %43 = vector.broadcast %42 : vector<1x16xf32> to vector<256x16xf32>
    %44 = arith.addf %41, %43 : vector<256x16xf32>
    %c0_34 = arith.constant 0 : index
    %c0_35 = arith.constant 0 : index
    %c0_36 = arith.constant 0 : index
    %45 = vector.load %arg5[%c0_34, %c0_35, %c0_36] : memref<1x256x16xf32, #tpu.memory_space<vmem>>, vector<1x256x16xf32>
    %46 = vector.shape_cast %45 : vector<1x256x16xf32> to vector<256x16xf32>
    %47 = vector.shape_cast %44 : vector<256x16xf32> to vector<1x256x16xf32>
    tpu.vector_store %arg5[%c0_34, %c0_35, %c0_36], %47 {strides = array<i32>} : memref<1x256x16xf32, #tpu.memory_space<vmem>>, vector<1x256x16xf32>,
    return
  }
  func.func @transform_0(%arg0: i32, %arg1: i32) -> (i32, i32, i32, i32) {
    %c0_i32 = arith.constant 0 : i32
    %c0_i32_0 = arith.constant 0 : i32
    %c0_i32_1 = arith.constant 0 : i32
    %c0_i32_2 = arith.constant 0 : i32
    return %arg0, %c0_i32, %c0_i32_0, %c0_i32_1 : i32, i32, i32, i32
  }
  func.func @transform_1(%arg0: i32, %arg1: i32) -> (i32, i32) {
    %c0_i32 = arith.constant 0 : i32
    %c0_i32_0 = arith.constant 0 : i32
    %c0_i32_1 = arith.constant 0 : i32
    return %c0_i32, %c0_i32_0 : i32, i32
  }
  func.func @transform_2(%arg0: i32, %arg1: i32) -> (i32, i32) {
    %c0_i32 = arith.constant 0 : i32
    %c0_i32_0 = arith.constant 0 : i32
    %c0_i32_1 = arith.constant 0 : i32
    return %c0_i32, %c0_i32_0 : i32, i32
  }
  func.func @transform_3(%arg0: i32, %arg1: i32) -> (i32, i32, i32) {
    %c0_i32 = arith.constant 0 : i32
    %c0_i32_0 = arith.constant 0 : i32
    return %arg0, %arg1, %c0_i32 : i32, i32, i32
  }
}

</mosaic_0001>

<llo_original>
// kernel: tile.9
$region0: #{tile.9}
  %s0 = inlined_call_operand.vmem [shape: f32[4,4], index: 0, kind: input, shape index: {}]
  %s1 = inlined_call_operand.vmem [shape: f32[1,16], index: 1, kind: output, shape index: {}]
  $region1: #{tile.9} parent=0
    #allocation0 [shape = 'u8[4096]{0}', space=vmem, size = 0x1000, scoped, tag = 'scoped mem for output reshape']
    #allocation1 [shape = 'u8[4096]{0}', space=vmem, size = 0x1000, scoped, tag = 'scoped mem for input reshape']
    %s3 = ssub.s32 16, 1
    %v4 = vld [vmem:[%s0] sm:%s3]
    %5 = vst [vmem:[#allocation1] sm:%s3] %v4
    %v6 = vld [vmem:[#allocation1] sm:$0x1]
    %vm7 = vcmask 31744
    %8 = vst.msk [vmem:[#allocation0] sm:$0x1] %vm7, %v6
    %s9 = scalar_lea.vmem [#allocation1], 3
    %v10 = vld [vmem:[%s9] sm:$0x1]
    %11 = vrot.lane.b32.xlu0 %v10, 12
    %v12 = vpop.permute.xlu0 %11
    %vm13 = vcmask 130144
    %14 = vst.msk [vmem:[#allocation0] sm:$0x1] %vm13, %v12
    %s15 = scalar_lea.vmem [#allocation1], 2
    %v16 = vld [vmem:[%s15] sm:$0x1]
    %17 = vrot.lane.b32.xlu0 %v16, 8
    %v18 = vpop.permute.xlu0 %17
    %vm19 = vcmask 97344
    %20 = vst.msk [vmem:[#allocation0] sm:$0x1] %vm19, %v18
    %s21 = scalar_lea.vmem [#allocation1], 1
    %v22 = vld [vmem:[%s21] sm:$0x1]
    %23 = vrot.lane.b32.xlu0 %v22, 4
    %v24 = vpop.permute.xlu0 %23
    %vm25 = vcmask 64544
    %26 = vst.msk [vmem:[#allocation0] sm:$0x1] %vm25, %v24
    %s28 = ssub.s32 2, 1
    %v29 = vld [vmem:[#allocation0] sm:%s28]
    %s31 = ssub.s32 2, 1
    %32 = vst [vmem:[%s1] sm:%s31] %v29

// kernel: tile.8
$region0: #{tile.8}
  #allocation0 [shape = 's32[1]{0}', space=sflag, size = 0x4, scoped, tag = 'scoped memory for tile.8']
  %s0 = inlined_call_operand.vmem [shape: f32[4], index: 0, kind: input, shape index: {}]
  %s1 = inlined_call_operand.vmem [shape: f32[4,4], index: 1, kind: output, shape index: {}]
  // Predicated region
  $region2: #{tile.8} parent=0 // pred_check
    _
  $region3: #{tile.8} parent=0 // pred_check_branch
    %3 = sbr.rel (0) target = $region5
  $region4: #{tile.8} parent=0 // pred_region
    _
  $region5: #{tile.8} parent=0 // pred_fallthru
    _
  %v4 = vld [vmem:[%s0] ss:$0 sm:$0xff]
  %5 = vst [vmem:[%s1] sm:$0xf] %v4

// kernel: upsample.1
$region0: #{upsample.1}
  #allocation0 [shape = 'u32[]', space=smem, size = 0x4, offset = 0x4, fixed_abs, tag = 'smem constant byte address 0x4 - core index']
  #allocation1 [shape = 'u32[72,128]{1,0:T(1,128)}', space=vmem, size = 0x9000, scoped, tag = 'internal scratch']
  %s0 = inlined_call_operand.vmem [shape: f32[2,18,18,4], index: 0, kind: input, shape index: {}]
  %s1 = inlined_call_operand.vmem [shape: f32[36,16], index: 1, kind: input, shape index: {}]
  %s2 = inlined_call_operand.vmem [shape: f32[1,16], index: 2, kind: input, shape index: {}]
  %s3 = inlined_call_operand.vmem [shape: f32[2,256,16], index: 3, kind: output, shape index: {}]
  %s4 = sld [smem:[#allocation0]]
  $region45: #{upsample.1} parent=0
    _
  %s6 = ssub.s32 1, %s4
  %s7 = scalar_select 0, %s6, %s4
  loop: start=0, step=1, limit=4
  $region2: #{upsample.1} parent=0 // loop_pre_header
    _
  $region3: #{upsample.1} parent=0 // loop_header
    %s9 = sphi 0, %s13
    %p10 = scmp.ge.s32.totalorder %s9, 4
    %s16 = sphi 0, %s28
    %s17 = sphi 0, %s24
    %s18 = sphi 0, %s16
    %s19 = sphi 0, %s17
    %s20 = sphi 0, %s18
    %s21 = sphi 0, %s19
    %s31 = sphi 0, %s33
    %s34 = sphi 0, %s31
    %s35 = sphi 0, %s34
    %s51 = sphi 0, %s35
    %s55 = sphi 0, %s55
    %s57 = sphi 0, %s55
    %s58 = sphi 0, %s57
    %s72 = sphi 0, %s58
    %s76 = sphi 0, %s76
    %s78 = sphi 0, %s76
    %s79 = sphi 0, %s78
    %s93 = sphi 0, %s79
    %s101 = sphi 0, %s103
    %s104 = sphi 0, %s101
    %s105 = sphi 0, %s104
    %s121 = sphi 0, %s105
  $region4: #{upsample.1} parent=0 // loop_header_branch
    %12 = sbr.rel (%p10) target = $region8
  $region5: #{upsample.1} parent=0 // loop_body
    %s14 = ssub.s32 %s9, 1
    %s15 = ssub.s32 %s9, 2
    %s22 = sadd.s32 1, %s17
    %p23 = scmp.ge.s32.totalorder %s22, 1
    %s24 = scalar_select %p23, 0, %s22
    %s25 = sadd.s32 1, %s16
    %s26 = scalar_select %p23, %s25, %s16
    %p27 = scmp.ge.s32.totalorder %s26, 2
    %s28 = scalar_select %p27, 0, %s26
    %s29 = ssub.s32 %s16, %s28
    %p30 = scmp.eq.s32.totalorder %s29, 0
    %s32 = sadd.s32 %s31, 1
    %s33 = scalar_select %p30, %s31, %s32
    %p36 = pneg %p30
    %p37 = scmp.eq.s32.totalorder %s9, 1
    %p38 = por %p36, %p37
    %p39 = scmp.ne.s32.totalorder %s31, %s34
    %p40 = scmp.eq.s32.totalorder %s9, 0
    %p41 = por %p39, %p40
    %p42 = scmp.ne.s32.totalorder %s31, %s34
    %p43 = scmp.eq.s32.totalorder %s14, 1
    %p44 = por %p42, %p43
    %p45 = scmp.ne.s32.totalorder %s34, %s35
    %p46 = scmp.eq.s32.totalorder %s14, 0
    %p47 = por %p45, %p46
    %p48 = scmp.ne.s32.totalorder %s34, %s35
    %p49 = scmp.eq.s32.totalorder %s15, 1
    %p50 = por %p48, %p49
    %p52 = scmp.ne.s32.totalorder %s35, %s51
    %p53 = scmp.eq.s32.totalorder %s15, 0
    %p54 = por %p52, %p53
    %s56 = sadd.s32 %s55, 1
    %p59 = scmp.eq.s32.totalorder %s9, 1
    %p60 = scmp.ne.s32.totalorder %s55, %s57
    %p61 = scmp.eq.s32.totalorder %s9, 0
    %p62 = por %p60, %p61
    %p63 = scmp.ne.s32.totalorder %s55, %s57
    %p64 = scmp.eq.s32.totalorder %s14, 1
    %p65 = por %p63, %p64
    %p66 = scmp.ne.s32.totalorder %s57, %s58
    %p67 = scmp.eq.s32.totalorder %s14, 0
    %p68 = por %p66, %p67
    %p69 = scmp.ne.s32.totalorder %s57, %s58
    %p70 = scmp.eq.s32.totalorder %s15, 1
    %p71 = por %p69, %p70
    %p73 = scmp.ne.s32.totalorder %s58, %s72
    %p74 = scmp.eq.s32.totalorder %s15, 0
    %p75 = por %p73, %p74
    %s77 = sadd.s32 %s76, 1
    %p80 = scmp.eq.s32.totalorder %s9, 1
    %p81 = scmp.ne.s32.totalorder %s76, %s78
    %p82 = scmp.eq.s32.totalorder %s9, 0
    %p83 = por %p81, %p82
    %p84 = scmp.ne.s32.totalorder %s76, %s78
    %p85 = scmp.eq.s32.totalorder %s14, 1
    %p86 = por %p84, %p85
    %p87 = scmp.ne.s32.totalorder %s78, %s79
    %p88 = scmp.eq.s32.totalorder %s14, 0
    %p89 = por %p87, %p88
    %p90 = scmp.ne.s32.totalorder %s78, %s79
    %p91 = scmp.eq.s32.totalorder %s15, 1
    %p92 = por %p90, %p91
    %p94 = scmp.ne.s32.totalorder %s79, %s93
    %p95 = scmp.eq.s32.totalorder %s15, 0
    %p96 = por %p94, %p95
    %s97 = ssub.s32 %s16, %s28
    %s98 = ssub.s32 %s17, %s24
    %s99 = sor.u32 %s97, %s98
    %p100 = scmp.eq.s32.totalorder %s99, 0
    %s102 = sadd.s32 %s101, 1
    %s103 = scalar_select %p100, %s101, %s102
    %p106 = pneg %p100
    %p107 = scmp.eq.s32.totalorder %s9, 1
    %p108 = por %p106, %p107
    %p109 = scmp.ne.s32.totalorder %s101, %s104
    %p110 = scmp.eq.s32.totalorder %s9, 0
    %p111 = por %p109, %p110
    %p112 = scmp.ne.s32.totalorder %s101, %s104
    %p113 = scmp.eq.s32.totalorder %s14, 1
    %p114 = por %p112, %p113
    %p115 = scmp.ne.s32.totalorder %s104, %s105
    %p116 = scmp.eq.s32.totalorder %s14, 0
    %p117 = por %p115, %p116
    %p118 = scmp.ne.s32.totalorder %s104, %s105
    %p119 = scmp.eq.s32.totalorder %s15, 1
    %p120 = por %p118, %p119
    %p122 = scmp.ne.s32.totalorder %s105, %s121
    %p123 = scmp.eq.s32.totalorder %s15, 0
    %p124 = por %p122, %p123
    %p125 = scmp.le.s32.totalorder 1, %s9
    %p126 = scmp.lt.s32.totalorder %s9, 3
    %p127 = pnand %p125, %p126
    %p128 = pneg %p127
    // Predicated region
    $region9: #{upsample.1} parent=5 // pred_check
      _
    $region10: #{upsample.1} parent=5 // pred_check_branch
      %130 = sbr.rel (%p127) target = $region12
    $region11: #{upsample.1} parent=5 // pred_region
      %s131 = ssub.s32 %s9, 1
      // Predicated region
      $region13: #{upsample.1} parent=11 // pred_check
        %p132 = pneg %p68
      $region14: #{upsample.1} parent=11 // pred_check_branch
        %134 = sbr.rel (%p132) target = $region16
      $region15: #{upsample.1} parent=11 // pred_region
        _
      $region16: #{upsample.1} parent=11 // pred_fallthru
        _
      // Predicated region
      $region17: #{upsample.1} parent=11 // pred_check
        %p135 = pneg %p89
      $region18: #{upsample.1} parent=11 // pred_check_branch
        %137 = sbr.rel (%p135) target = $region20
      $region19: #{upsample.1} parent=11 // pred_region
        _
      $region20: #{upsample.1} parent=11 // pred_fallthru
        _
    $region12: #{upsample.1} parent=5 // pred_fallthru
      _
    %p138 = scmp.lt.s32.totalorder %s9, 2
    // Predicated region
    $region21: #{upsample.1} parent=5 // pred_check
      %p139 = pneg %p138
    $region22: #{upsample.1} parent=5 // pred_check_branch
      %141 = sbr.rel (%p139) target = $region24
    $region23: #{upsample.1} parent=5 // pred_region
      // Predicated region
      $region25: #{upsample.1} parent=23 // pred_check
        %p142 = pneg %p41
      $region26: #{upsample.1} parent=23 // pred_check_branch
        %144 = sbr.rel (%p142) target = $region28
      $region27: #{upsample.1} parent=23 // pred_region
        %p145 = scmp.lt.s32.totalorder %s16, 1
        %s146 = scalar_select %p145, %s16, 1
        %s147 = smul.addr %s146, 54
        %s148 = smul.addr %s147, 8
        %s149 = scalar_lea.vmem %s0, %s148
      $region28: #{upsample.1} parent=23 // pred_fallthru
        _
    $region24: #{upsample.1} parent=5 // pred_fallthru
      _
    %p150 = scmp.le.s32.totalorder 1, %s9
    %p151 = scmp.lt.s32.totalorder %s9, 3
    %p152 = pnand %p150, %p151
    %p153 = pneg %p152
    // Predicated region
    $region29: #{upsample.1} parent=5 // pred_check
      _
    $region30: #{upsample.1} parent=5 // pred_check_branch
      %155 = sbr.rel (%p152) target = $region32
    $region31: #{upsample.1} parent=5 // pred_region
      %s156 = ssub.s32 %s9, 1
      %p157 = scmp.lt.s32.totalorder %s18, 1
      %s158 = scalar_select %p157, %s18, 1
      %s159 = smul.addr %s158, 54
      %s160 = smul.addr %s159, 8
      %s161 = scalar_lea.vmem %s0, %s160
      %p162 = pneg %p47
      %p163 = pneg %p44
      %p164 = pneg %p68
      %p165 = pneg %p65
      %p166 = pneg %p89
      %p167 = pneg %p86
      %p168 = pneg %p117
      %p169 = pneg %p114
      %s170 = smul.u32 32, %s19
      %p171 = scmp.lt.s32.totalorder %s18, 1
      %s172 = scalar_select %p171, %s18, 1
      %p173 = scmp.lt.s32.totalorder %s170, 31
      %s174 = scalar_select %p173, %s170, 31
      %s175 = smul.addr %s172, 32
      %s176 = sadd.s32 %s174, %s175
      %s177 = smul.addr %s176, 8
      %s178 = scalar_lea.vmem %s3, %s177
      %p179 = scmp.lt.s32.totalorder %s18, 1
      %s180 = scalar_select %p179, %s18, 1
      %s181 = smul.addr %s180, 54
      %s182 = smul.addr %s181, 8
      %s183 = scalar_lea.vmem %s0, %s182
      %s184 = smul.u32 32, %s19
      %p185 = scmp.lt.s32.totalorder %s18, 1
      %s186 = scalar_select %p185, %s18, 1
      %p187 = scmp.lt.s32.totalorder %s184, 31
      %s188 = scalar_select %p187, %s184, 31
      %s189 = smul.addr %s186, 32
      %s190 = sadd.s32 %s188, %s189
      %s191 = smul.addr %s190, 8
      %s192 = scalar_lea.vmem %s3, %s191
      %s193 = smul.u32 32, %s19
      %s194 = smul.u32 %s19, 16
      %s195 = smul.u32 %s194, 24
      %s196 = scalar_lea.vmem %s183, %s195
      %v197 = vld [vmem:[%s196] sm:$0xff]
      %v198 = vld [vmem:[%s196 + $0x8] sm:$0xff]
      %v199 = vld [vmem:[%s196 + $0x18] sm:$0xff]
      %v200 = vld [vmem:[%s196 + $0x20] sm:$0xff]
      %v201 = vld [vmem:[%s196 + $0x30] sm:$0xff]
      %v202 = vld [vmem:[%s196 + $0x38] sm:$0xff]
      %v203 = vld [vmem:[%s196 + $0x48] sm:$0xff]
      %v204 = vld [vmem:[%s196 + $0x50] sm:$0xff]
      %v205 = vld [vmem:[%s196 + $0x60] sm:$0xff]
      %v206 = vld [vmem:[%s196 + $0x68] sm:$0xff]
      %v207 = vld [vmem:[%s196 + $0x78] sm:$0xff]
      %v208 = vld [vmem:[%s196 + $0x80] sm:$0xff]
      %v209 = vld [vmem:[%s196 + $0x90] sm:$0xff]
      %v210 = vld [vmem:[%s196 + $0x98] sm:$0xff]
      %v211 = vld [vmem:[%s196 + $0xa8] sm:$0xff]
      %v212 = vld [vmem:[%s196 + $0xb0] sm:$0xff]
      %v213 = vld [vmem:[%s196 + $0xc0] sm:$0xff]
      %v214 = vld [vmem:[%s196 + $0xc8] sm:$0xff]
      %v215 = vld [vmem:[%s196 + $0xd8] sm:$0xff]
      %v216 = vld [vmem:[%s196 + $0xe0] sm:$0xff]
      %v217 = vld [vmem:[%s196 + $0xf0] sm:$0xff]
      %v218 = vld [vmem:[%s196 + $0xf8] sm:$0xff]
      %v219 = vld [vmem:[%s196 + $0x108] sm:$0xff]
      %v220 = vld [vmem:[%s196 + $0x110] sm:$0xff]
      %v221 = vld [vmem:[%s196 + $0x120] sm:$0xff]
      %v222 = vld [vmem:[%s196 + $0x128] sm:$0xff]
      %v223 = vld [vmem:[%s196 + $0x138] sm:$0xff]
      %v224 = vld [vmem:[%s196 + $0x140] sm:$0xff]
      %v225 = vld [vmem:[%s196 + $0x150] sm:$0xff]
      %v226 = vld [vmem:[%s196 + $0x158] sm:$0xff]
      %v227 = vld [vmem:[%s196 + $0x168] sm:$0xff]
      %v228 = vld [vmem:[%s196 + $0x170] sm:$0xff]
      %v229 = vld [vmem:[%s196 + $0x1] sm:$0xff]
      %v230 = vld [vmem:[%s196 + $0x9] sm:$0xff]
      %v231 = vld [vmem:[%s196 + $0x19] sm:$0xff]
      %v232 = vld [vmem:[%s196 + $0x21] sm:$0xff]
      %v233 = vld [vmem:[%s196 + $0x31] sm:$0xff]
      %v234 = vld [vmem:[%s196 + $0x39] sm:$0xff]
      %v235 = vld [vmem:[%s196 + $0x49] sm:$0xff]
      %v236 = vld [vmem:[%s196 + $0x51] sm:$0xff]
      %v237 = vld [vmem:[%s196 + $0x61] sm:$0xff]
      %v238 = vld [vmem:[%s196 + $0x69] sm:$0xff]
      %v239 = vld [vmem:[%s196 + $0x79] sm:$0xff]
      %v240 = vld [vmem:[%s196 + $0x81] sm:$0xff]
      %v241 = vld [vmem:[%s196 + $0x91] sm:$0xff]
      %v242 = vld [vmem:[%s196 + $0x99] sm:$0xff]
      %v243 = vld [vmem:[%s196 + $0xa9] sm:$0xff]
      %v244 = vld [vmem:[%s196 + $0xb1] sm:$0xff]
      %v245 = vld [vmem:[%s196 + $0xc1] sm:$0xff]
      %v246 = vld [vmem:[%s196 + $0xc9] sm:$0xff]
      %v247 = vld [vmem:[%s196 + $0xd9] sm:$0xff]
      %v248 = vld [vmem:[%s196 + $0xe1] sm:$0xff]
      %v249 = vld [vmem:[%s196 + $0xf1] sm:$0xff]
      %v250 = vld [vmem:[%s196 + $0xf9] sm:$0xff]
      %v251 = vld [vmem:[%s196 + $0x109] sm:$0xff]
      %v252 = vld [vmem:[%s196 + $0x111] sm:$0xff]
      %v253 = vld [vmem:[%s196 + $0x121] sm:$0xff]
      %v254 = vld [vmem:[%s196 + $0x129] sm:$0xff]
      %v255 = vld [vmem:[%s196 + $0x139] sm:$0xff]
      %v256 = vld [vmem:[%s196 + $0x141] sm:$0xff]
      %v257 = vld [vmem:[%s196 + $0x151] sm:$0xff]
      %v258 = vld [vmem:[%s196 + $0x159] sm:$0xff]
      %v259 = vld [vmem:[%s196 + $0x169] sm:$0xff]
      %v260 = vld [vmem:[%s196 + $0x171] sm:$0xff]
      %v261 = vld [vmem:[%s196 + $0x2] sm:$0xff]
      %v262 = vld [vmem:[%s196 + $0xa] sm:$0xff]
      %v263 = vld [vmem:[%s196 + $0x1a] sm:$0xff]
      %v264 = vld [vmem:[%s196 + $0x22] sm:$0xff]
      %v265 = vld [vmem:[%s196 + $0x32] sm:$0xff]
      %v266 = vld [vmem:[%s196 + $0x3a] sm:$0xff]
      %v267 = vld [vmem:[%s196 + $0x4a] sm:$0xff]
      %v268 = vld [vmem:[%s196 + $0x52] sm:$0xff]
      %v269 = vld [vmem:[%s196 + $0x62] sm:$0xff]
      %v270 = vld [vmem:[%s196 + $0x6a] sm:$0xff]
      %v271 = vld [vmem:[%s196 + $0x7a] sm:$0xff]
      %v272 = vld [vmem:[%s196 + $0x82] sm:$0xff]
      %v273 = vld [vmem:[%s196 + $0x92] sm:$0xff]
      %v274 = vld [vmem:[%s196 + $0x9a] sm:$0xff]
      %v275 = vld [vmem:[%s196 + $0xaa] sm:$0xff]
      %v276 = vld [vmem:[%s196 + $0xb2] sm:$0xff]
      %v277 = vld [vmem:[%s196 + $0xc2] sm:$0xff]
      %v278 = vld [vmem:[%s196 + $0xca] sm:$0xff]
      %v279 = vld [vmem:[%s196 + $0xda] sm:$0xff]
      %v280 = vld [vmem:[%s196 + $0xe2] sm:$0xff]
      %v281 = vld [vmem:[%s196 + $0xf2] sm:$0xff]
      %v282 = vld [vmem:[%s196 + $0xfa] sm:$0xff]
      %v283 = vld [vmem:[%s196 + $0x10a] sm:$0xff]
      %v284 = vld [vmem:[%s196 + $0x112] sm:$0xff]
      %v285 = vld [vmem:[%s196 + $0x122] sm:$0xff]
      %v286 = vld [vmem:[%s196 + $0x12a] sm:$0xff]
      %v287 = vld [vmem:[%s196 + $0x13a] sm:$0xff]
      %v288 = vld [vmem:[%s196 + $0x142] sm:$0xff]
      %v289 = vld [vmem:[%s196 + $0x152] sm:$0xff]
      %v290 = vld [vmem:[%s196 + $0x15a] sm:$0xff]
      %v291 = vld [vmem:[%s196 + $0x16a] sm:$0xff]
      %v292 = vld [vmem:[%s196 + $0x172] sm:$0xff]
      %s293 = sadd.s32 %s194, 1
      %s294 = smul.u32 %s293, 24
      %s295 = scalar_lea.vmem %s183, %s294
      %v296 = vld [vmem:[%s295] sm:$0xff]
      %v297 = vld [vmem:[%s295 + $0x8] sm:$0xff]
      %v298 = vld [vmem:[%s295 + $0x18] sm:$0xff]
      %v299 = vld [vmem:[%s295 + $0x20] sm:$0xff]
      %v300 = vld [vmem:[%s295 + $0x30] sm:$0xff]
      %v301 = vld [vmem:[%s295 + $0x38] sm:$0xff]
      %v302 = vld [vmem:[%s295 + $0x48] sm:$0xff]
      %v303 = vld [vmem:[%s295 + $0x50] sm:$0xff]
      %v304 = vld [vmem:[%s295 + $0x60] sm:$0xff]
      %v305 = vld [vmem:[%s295 + $0x68] sm:$0xff]
      %v306 = vld [vmem:[%s295 + $0x78] sm:$0xff]
      %v307 = vld [vmem:[%s295 + $0x80] sm:$0xff]
      %v308 = vld [vmem:[%s295 + $0x90] sm:$0xff]
      %v309 = vld [vmem:[%s295 + $0x98] sm:$0xff]
      %v310 = vld [vmem:[%s295 + $0xa8] sm:$0xff]
      %v311 = vld [vmem:[%s295 + $0xb0] sm:$0xff]
      %v312 = vld [vmem:[%s295 + $0xc0] sm:$0xff]
      %v313 = vld [vmem:[%s295 + $0xc8] sm:$0xff]
      %v314 = vld [vmem:[%s295 + $0xd8] sm:$0xff]
      %v315 = vld [vmem:[%s295 + $0xe0] sm:$0xff]
      %v316 = vld [vmem:[%s295 + $0xf0] sm:$0xff]
      %v317 = vld [vmem:[%s295 + $0xf8] sm:$0xff]
      %v318 = vld [vmem:[%s295 + $0x108] sm:$0xff]
      %v319 = vld [vmem:[%s295 + $0x110] sm:$0xff]
      %v320 = vld [vmem:[%s295 + $0x120] sm:$0xff]
      %v321 = vld [vmem:[%s295 + $0x128] sm:$0xff]
      %v322 = vld [vmem:[%s295 + $0x138] sm:$0xff]
      %v323 = vld [vmem:[%s295 + $0x140] sm:$0xff]
      %v324 = vld [vmem:[%s295 + $0x150] sm:$0xff]
      %v325 = vld [vmem:[%s295 + $0x158] sm:$0xff]
      %v326 = vld [vmem:[%s295 + $0x168] sm:$0xff]
      %v327 = vld [vmem:[%s295 + $0x170] sm:$0xff]
      %v328 = vld [vmem:[%s295 + $0x1] sm:$0xff]
      %v329 = vld [vmem:[%s295 + $0x9] sm:$0xff]
      %v330 = vld [vmem:[%s295 + $0x19] sm:$0xff]
      %v331 = vld [vmem:[%s295 + $0x21] sm:$0xff]
      %v332 = vld [vmem:[%s295 + $0x31] sm:$0xff]
      %v333 = vld [vmem:[%s295 + $0x39] sm:$0xff]
      %v334 = vld [vmem:[%s295 + $0x49] sm:$0xff]
      %v335 = vld [vmem:[%s295 + $0x51] sm:$0xff]
      %v336 = vld [vmem:[%s295 + $0x61] sm:$0xff]
      %v337 = vld [vmem:[%s295 + $0x69] sm:$0xff]
      %v338 = vld [vmem:[%s295 + $0x79] sm:$0xff]
      %v339 = vld [vmem:[%s295 + $0x81] sm:$0xff]
      %v340 = vld [vmem:[%s295 + $0x91] sm:$0xff]
      %v341 = vld [vmem:[%s295 + $0x99] sm:$0xff]
      %v342 = vld [vmem:[%s295 + $0xa9] sm:$0xff]
      %v343 = vld [vmem:[%s295 + $0xb1] sm:$0xff]
      %v344 = vld [vmem:[%s295 + $0xc1] sm:$0xff]
      %v345 = vld [vmem:[%s295 + $0xc9] sm:$0xff]
      %v346 = vld [vmem:[%s295 + $0xd9] sm:$0xff]
      %v347 = vld [vmem:[%s295 + $0xe1] sm:$0xff]
      %v348 = vld [vmem:[%s295 + $0xf1] sm:$0xff]
      %v349 = vld [vmem:[%s295 + $0xf9] sm:$0xff]
      %v350 = vld [vmem:[%s295 + $0x109] sm:$0xff]
      %v351 = vld [vmem:[%s295 + $0x111] sm:$0xff]
      %v352 = vld [vmem:[%s295 + $0x121] sm:$0xff]
      %v353 = vld [vmem:[%s295 + $0x129] sm:$0xff]
      %v354 = vld [vmem:[%s295 + $0x139] sm:$0xff]
      %v355 = vld [vmem:[%s295 + $0x141] sm:$0xff]
      %v356 = vld [vmem:[%s295 + $0x151] sm:$0xff]
      %v357 = vld [vmem:[%s295 + $0x159] sm:$0xff]
      %v358 = vld [vmem:[%s295 + $0x169] sm:$0xff]
      %v359 = vld [vmem:[%s295 + $0x171] sm:$0xff]
      %v360 = vld [vmem:[%s295 + $0x2] sm:$0xff]
      %v361 = vld [vmem:[%s295 + $0xa] sm:$0xff]
      %v362 = vld [vmem:[%s295 + $0x1a] sm:$0xff]
      %v363 = vld [vmem:[%s295 + $0x22] sm:$0xff]
      %v364 = vld [vmem:[%s295 + $0x32] sm:$0xff]
      %v365 = vld [vmem:[%s295 + $0x3a] sm:$0xff]
      %v366 = vld [vmem:[%s295 + $0x4a] sm:$0xff]
      %v367 = vld [vmem:[%s295 + $0x52] sm:$0xff]
      %v368 = vld [vmem:[%s295 + $0x62] sm:$0xff]
      %v369 = vld [vmem:[%s295 + $0x6a] sm:$0xff]
      %v370 = vld [vmem:[%s295 + $0x7a] sm:$0xff]
      %v371 = vld [vmem:[%s295 + $0x82] sm:$0xff]
      %v372 = vld [vmem:[%s295 + $0x92] sm:$0xff]
      %v373 = vld [vmem:[%s295 + $0x9a] sm:$0xff]
      %v374 = vld [vmem:[%s295 + $0xaa] sm:$0xff]
      %v375 = vld [vmem:[%s295 + $0xb2] sm:$0xff]
      %v376 = vld [vmem:[%s295 + $0xc2] sm:$0xff]
      %v377 = vld [vmem:[%s295 + $0xca] sm:$0xff]
      %v378 = vld [vmem:[%s295 + $0xda] sm:$0xff]
      %v379 = vld [vmem:[%s295 + $0xe2] sm:$0xff]
      %v380 = vld [vmem:[%s295 + $0xf2] sm:$0xff]
      %v381 = vld [vmem:[%s295 + $0xfa] sm:$0xff]
      %v382 = vld [vmem:[%s295 + $0x10a] sm:$0xff]
      %v383 = vld [vmem:[%s295 + $0x112] sm:$0xff]
      %v384 = vld [vmem:[%s295 + $0x122] sm:$0xff]
      %v385 = vld [vmem:[%s295 + $0x12a] sm:$0xff]
      %v386 = vld [vmem:[%s295 + $0x13a] sm:$0xff]
      %v387 = vld [vmem:[%s295 + $0x142] sm:$0xff]
      %v388 = vld [vmem:[%s295 + $0x152] sm:$0xff]
      %v389 = vld [vmem:[%s295 + $0x15a] sm:$0xff]
      %v390 = vld [vmem:[%s295 + $0x16a] sm:$0xff]
      %v391 = vld [vmem:[%s295 + $0x172] sm:$0xff]
      %s392 = sadd.s32 %s194, 2
      %s393 = smul.u32 %s392, 24
      %s394 = scalar_lea.vmem %s183, %s393
      %v395 = vld [vmem:[%s394] sm:$0xff]
      %v396 = vld [vmem:[%s394 + $0x8] sm:$0xff]
      %v397 = vld [vmem:[%s394 + $0x18] sm:$0xff]
      %v398 = vld [vmem:[%s394 + $0x20] sm:$0xff]
      %v399 = vld [vmem:[%s394 + $0x30] sm:$0xff]
      %v400 = vld [vmem:[%s394 + $0x38] sm:$0xff]
      %v401 = vld [vmem:[%s394 + $0x48] sm:$0xff]
      %v402 = vld [vmem:[%s394 + $0x50] sm:$0xff]
      %v403 = vld [vmem:[%s394 + $0x60] sm:$0xff]
      %v404 = vld [vmem:[%s394 + $0x68] sm:$0xff]
      %v405 = vld [vmem:[%s394 + $0x78] sm:$0xff]
      %v406 = vld [vmem:[%s394 + $0x80] sm:$0xff]
      %v407 = vld [vmem:[%s394 + $0x90] sm:$0xff]
      %v408 = vld [vmem:[%s394 + $0x98] sm:$0xff]
      %v409 = vld [vmem:[%s394 + $0xa8] sm:$0xff]
      %v410 = vld [vmem:[%s394 + $0xb0] sm:$0xff]
      %v411 = vld [vmem:[%s394 + $0xc0] sm:$0xff]
      %v412 = vld [vmem:[%s394 + $0xc8] sm:$0xff]
      %v413 = vld [vmem:[%s394 + $0xd8] sm:$0xff]
      %v414 = vld [vmem:[%s394 + $0xe0] sm:$0xff]
      %v415 = vld [vmem:[%s394 + $0xf0] sm:$0xff]
      %v416 = vld [vmem:[%s394 + $0xf8] sm:$0xff]
      %v417 = vld [vmem:[%s394 + $0x108] sm:$0xff]
      %v418 = vld [vmem:[%s394 + $0x110] sm:$0xff]
      %v419 = vld [vmem:[%s394 + $0x120] sm:$0xff]
      %v420 = vld [vmem:[%s394 + $0x128] sm:$0xff]
      %v421 = vld [vmem:[%s394 + $0x138] sm:$0xff]
      %v422 = vld [vmem:[%s394 + $0x140] sm:$0xff]
      %v423 = vld [vmem:[%s394 + $0x150] sm:$0xff]
      %v424 = vld [vmem:[%s394 + $0x158] sm:$0xff]
      %v425 = vld [vmem:[%s394 + $0x168] sm:$0xff]
      %v426 = vld [vmem:[%s394 + $0x170] sm:$0xff]
      %v427 = vld [vmem:[%s394 + $0x1] sm:$0xff]
      %v428 = vld [vmem:[%s394 + $0x9] sm:$0xff]
      %v429 = vld [vmem:[%s394 + $0x19] sm:$0xff]
      %v430 = vld [vmem:[%s394 + $0x21] sm:$0xff]
      %v431 = vld [vmem:[%s394 + $0x31] sm:$0xff]
      %v432 = vld [vmem:[%s394 + $0x39] sm:$0xff]
      %v433 = vld [vmem:[%s394 + $0x49] sm:$0xff]
      %v434 = vld [vmem:[%s394 + $0x51] sm:$0xff]
      %v435 = vld [vmem:[%s394 + $0x61] sm:$0xff]
      %v436 = vld [vmem:[%s394 + $0x69] sm:$0xff]
      %v437 = vld [vmem:[%s394 + $0x79] sm:$0xff]
      %v438 = vld [vmem:[%s394 + $0x81] sm:$0xff]
      %v439 = vld [vmem:[%s394 + $0x91] sm:$0xff]
      %v440 = vld [vmem:[%s394 + $0x99] sm:$0xff]
      %v441 = vld [vmem:[%s394 + $0xa9] sm:$0xff]
      %v442 = vld [vmem:[%s394 + $0xb1] sm:$0xff]
      %v443 = vld [vmem:[%s394 + $0xc1] sm:$0xff]
      %v444 = vld [vmem:[%s394 + $0xc9] sm:$0xff]
      %v445 = vld [vmem:[%s394 + $0xd9] sm:$0xff]
      %v446 = vld [vmem:[%s394 + $0xe1] sm:$0xff]
      %v447 = vld [vmem:[%s394 + $0xf1] sm:$0xff]
      %v448 = vld [vmem:[%s394 + $0xf9] sm:$0xff]
      %v449 = vld [vmem:[%s394 + $0x109] sm:$0xff]
      %v450 = vld [vmem:[%s394 + $0x111] sm:$0xff]
      %v451 = vld [vmem:[%s394 + $0x121] sm:$0xff]
      %v452 = vld [vmem:[%s394 + $0x129] sm:$0xff]
      %v453 = vld [vmem:[%s394 + $0x139] sm:$0xff]
      %v454 = vld [vmem:[%s394 + $0x141] sm:$0xff]
      %v455 = vld [vmem:[%s394 + $0x151] sm:$0xff]
      %v456 = vld [vmem:[%s394 + $0x159] sm:$0xff]
      %v457 = vld [vmem:[%s394 + $0x169] sm:$0xff]
      %v458 = vld [vmem:[%s394 + $0x171] sm:$0xff]
      %v459 = vld [vmem:[%s394 + $0x2] sm:$0xff]
      %v460 = vld [vmem:[%s394 + $0xa] sm:$0xff]
      %v461 = vld [vmem:[%s394 + $0x1a] sm:$0xff]
      %v462 = vld [vmem:[%s394 + $0x22] sm:$0xff]
      %v463 = vld [vmem:[%s394 + $0x32] sm:$0xff]
      %v464 = vld [vmem:[%s394 + $0x3a] sm:$0xff]
      %v465 = vld [vmem:[%s394 + $0x4a] sm:$0xff]
      %v466 = vld [vmem:[%s394 + $0x52] sm:$0xff]
      %v467 = vld [vmem:[%s394 + $0x62] sm:$0xff]
      %v468 = vld [vmem:[%s394 + $0x6a] sm:$0xff]
      %v469 = vld [vmem:[%s394 + $0x7a] sm:$0xff]
      %v470 = vld [vmem:[%s394 + $0x82] sm:$0xff]
      %v471 = vld [vmem:[%s394 + $0x92] sm:$0xff]
      %v472 = vld [vmem:[%s394 + $0x9a] sm:$0xff]
      %v473 = vld [vmem:[%s394 + $0xaa] sm:$0xff]
      %v474 = vld [vmem:[%s394 + $0xb2] sm:$0xff]
      %v475 = vld [vmem:[%s394 + $0xc2] sm:$0xff]
      %v476 = vld [vmem:[%s394 + $0xca] sm:$0xff]
      %v477 = vld [vmem:[%s394 + $0xda] sm:$0xff]
      %v478 = vld [vmem:[%s394 + $0xe2] sm:$0xff]
      %v479 = vld [vmem:[%s394 + $0xf2] sm:$0xff]
      %v480 = vld [vmem:[%s394 + $0xfa] sm:$0xff]
      %v481 = vld [vmem:[%s394 + $0x10a] sm:$0xff]
      %v482 = vld [vmem:[%s394 + $0x112] sm:$0xff]
      %v483 = vld [vmem:[%s394 + $0x122] sm:$0xff]
      %v484 = vld [vmem:[%s394 + $0x12a] sm:$0xff]
      %v485 = vld [vmem:[%s394 + $0x13a] sm:$0xff]
      %v486 = vld [vmem:[%s394 + $0x142] sm:$0xff]
      %v487 = vld [vmem:[%s394 + $0x152] sm:$0xff]
      %v488 = vld [vmem:[%s394 + $0x15a] sm:$0xff]
      %v489 = vld [vmem:[%s394 + $0x16a] sm:$0xff]
      %v490 = vld [vmem:[%s394 + $0x172] sm:$0xff]
      %523 = vrot.lane.b32.xlu0 %v229, 4
      %v524 = vpop.permute.xlu0 %523
      %525 = vrot.lane.b32.xlu0 %v230, 4
      %v526 = vpop.permute.xlu0 %525
      %527 = vrot.lane.b32.xlu0 %v231, 4
      %v528 = vpop.permute.xlu0 %527
      %529 = vrot.lane.b32.xlu0 %v232, 4
      %v530 = vpop.permute.xlu0 %529
      %531 = vrot.lane.b32.xlu0 %v233, 4
      %v532 = vpop.permute.xlu0 %531
      %533 = vrot.lane.b32.xlu0 %v234, 4
      %v534 = vpop.permute.xlu0 %533
      %535 = vrot.lane.b32.xlu0 %v235, 4
      %v536 = vpop.permute.xlu0 %535
      %537 = vrot.lane.b32.xlu0 %v236, 4
      %v538 = vpop.permute.xlu0 %537
      %539 = vrot.lane.b32.xlu0 %v237, 4
      %v540 = vpop.permute.xlu0 %539
      %541 = vrot.lane.b32.xlu0 %v238, 4
      %v542 = vpop.permute.xlu0 %541
      %543 = vrot.lane.b32.xlu0 %v239, 4
      %v544 = vpop.permute.xlu0 %543
      %545 = vrot.lane.b32.xlu0 %v240, 4
      %v546 = vpop.permute.xlu0 %545
      %547 = vrot.lane.b32.xlu0 %v241, 4
      %v548 = vpop.permute.xlu0 %547
      %549 = vrot.lane.b32.xlu0 %v242, 4
      %v550 = vpop.permute.xlu0 %549
      %551 = vrot.lane.b32.xlu0 %v243, 4
      %v552 = vpop.permute.xlu0 %551
      %553 = vrot.lane.b32.xlu0 %v244, 4
      %v554 = vpop.permute.xlu0 %553
      %555 = vrot.lane.b32.xlu0 %v245, 4
      %v556 = vpop.permute.xlu0 %555
      %557 = vrot.lane.b32.xlu0 %v246, 4
      %v558 = vpop.permute.xlu0 %557
      %559 = vrot.lane.b32.xlu0 %v247, 4
      %v560 = vpop.permute.xlu0 %559
      %561 = vrot.lane.b32.xlu0 %v248, 4
      %v562 = vpop.permute.xlu0 %561
      %563 = vrot.lane.b32.xlu0 %v249, 4
      %v564 = vpop.permute.xlu0 %563
      %565 = vrot.lane.b32.xlu0 %v250, 4
      %v566 = vpop.permute.xlu0 %565
      %567 = vrot.lane.b32.xlu0 %v251, 4
      %v568 = vpop.permute.xlu0 %567
      %569 = vrot.lane.b32.xlu0 %v252, 4
      %v570 = vpop.permute.xlu0 %569
      %571 = vrot.lane.b32.xlu0 %v253, 4
      %v572 = vpop.permute.xlu0 %571
      %573 = vrot.lane.b32.xlu0 %v254, 4
      %v574 = vpop.permute.xlu0 %573
      %575 = vrot.lane.b32.xlu0 %v255, 4
      %v576 = vpop.permute.xlu0 %575
      %577 = vrot.lane.b32.xlu0 %v256, 4
      %v578 = vpop.permute.xlu0 %577
      %579 = vrot.lane.b32.xlu0 %v257, 4
      %v580 = vpop.permute.xlu0 %579
      %581 = vrot.lane.b32.xlu0 %v258, 4
      %v582 = vpop.permute.xlu0 %581
      %583 = vrot.lane.b32.xlu0 %v259, 4
      %v584 = vpop.permute.xlu0 %583
      %585 = vrot.lane.b32.xlu0 %v260, 4
      %v586 = vpop.permute.xlu0 %585
      %651 = vrot.lane.b32.xlu0 %v261, 8
      %v652 = vpop.permute.xlu0 %651
      %653 = vrot.lane.b32.xlu0 %v262, 8
      %v654 = vpop.permute.xlu0 %653
      %655 = vrot.lane.b32.xlu0 %v263, 8
      %v656 = vpop.permute.xlu0 %655
      %657 = vrot.lane.b32.xlu0 %v264, 8
      %v658 = vpop.permute.xlu0 %657
      %659 = vrot.lane.b32.xlu0 %v265, 8
      %v660 = vpop.permute.xlu0 %659
      %661 = vrot.lane.b32.xlu0 %v266, 8
      %v662 = vpop.permute.xlu0 %661
      %663 = vrot.lane.b32.xlu0 %v267, 8
      %v664 = vpop.permute.xlu0 %663
      %665 = vrot.lane.b32.xlu0 %v268, 8
      %v666 = vpop.permute.xlu0 %665
      %667 = vrot.lane.b32.xlu0 %v269, 8
      %v668 = vpop.permute.xlu0 %667
      %669 = vrot.lane.b32.xlu0 %v270, 8
      %v670 = vpop.permute.xlu0 %669
      %671 = vrot.lane.b32.xlu0 %v271, 8
      %v672 = vpop.permute.xlu0 %671
      %673 = vrot.lane.b32.xlu0 %v272, 8
      %v674 = vpop.permute.xlu0 %673
      %675 = vrot.lane.b32.xlu0 %v273, 8
      %v676 = vpop.permute.xlu0 %675
      %677 = vrot.lane.b32.xlu0 %v274, 8
      %v678 = vpop.permute.xlu0 %677
      %679 = vrot.lane.b32.xlu0 %v275, 8
      %v680 = vpop.permute.xlu0 %679
      %681 = vrot.lane.b32.xlu0 %v276, 8
      %v682 = vpop.permute.xlu0 %681
      %683 = vrot.lane.b32.xlu0 %v277, 8
      %v684 = vpop.permute.xlu0 %683
      %685 = vrot.lane.b32.xlu0 %v278, 8
      %v686 = vpop.permute.xlu0 %685
      %687 = vrot.lane.b32.xlu0 %v279, 8
      %v688 = vpop.permute.xlu0 %687
      %689 = vrot.lane.b32.xlu0 %v280, 8
      %v690 = vpop.permute.xlu0 %689
      %691 = vrot.lane.b32.xlu0 %v281, 8
      %v692 = vpop.permute.xlu0 %691
      %693 = vrot.lane.b32.xlu0 %v282, 8
      %v694 = vpop.permute.xlu0 %693
      %695 = vrot.lane.b32.xlu0 %v283, 8
      %v696 = vpop.permute.xlu0 %695
      %697 = vrot.lane.b32.xlu0 %v284, 8
      %v698 = vpop.permute.xlu0 %697
      %699 = vrot.lane.b32.xlu0 %v285, 8
      %v700 = vpop.permute.xlu0 %699
      %701 = vrot.lane.b32.xlu0 %v286, 8
      %v702 = vpop.permute.xlu0 %701
      %703 = vrot.lane.b32.xlu0 %v287, 8
      %v704 = vpop.permute.xlu0 %703
      %705 = vrot.lane.b32.xlu0 %v288, 8
      %v706 = vpop.permute.xlu0 %705
      %707 = vrot.lane.b32.xlu0 %v289, 8
      %v708 = vpop.permute.xlu0 %707
      %709 = vrot.lane.b32.xlu0 %v290, 8
      %v710 = vpop.permute.xlu0 %709
      %711 = vrot.lane.b32.xlu0 %v291, 8
      %v712 = vpop.permute.xlu0 %711
      %713 = vrot.lane.b32.xlu0 %v292, 8
      %v714 = vpop.permute.xlu0 %713
      %779 = vrot.lane.b32.xlu0 %v296, 12
      %v780 = vpop.permute.xlu0 %779
      %781 = vrot.lane.b32.xlu0 %v297, 12
      %v782 = vpop.permute.xlu0 %781
      %783 = vrot.lane.b32.xlu0 %v298, 12
      %v784 = vpop.permute.xlu0 %783
      %785 = vrot.lane.b32.xlu0 %v299, 12
      %v786 = vpop.permute.xlu0 %785
      %787 = vrot.lane.b32.xlu0 %v300, 12
      %v788 = vpop.permute.xlu0 %787
      %789 = vrot.lane.b32.xlu0 %v301, 12
      %v790 = vpop.permute.xlu0 %789
      %791 = vrot.lane.b32.xlu0 %v302, 12
      %v792 = vpop.permute.xlu0 %791
      %793 = vrot.lane.b32.xlu0 %v303, 12
      %v794 = vpop.permute.xlu0 %793
      %795 = vrot.lane.b32.xlu0 %v304, 12
      %v796 = vpop.permute.xlu0 %795
      %797 = vrot.lane.b32.xlu0 %v305, 12
      %v798 = vpop.permute.xlu0 %797
      %799 = vrot.lane.b32.xlu0 %v306, 12
      %v800 = vpop.permute.xlu0 %799
      %801 = vrot.lane.b32.xlu0 %v307, 12
      %v802 = vpop.permute.xlu0 %801
      %803 = vrot.lane.b32.xlu0 %v308, 12
      %v804 = vpop.permute.xlu0 %803
      %805 = vrot.lane.b32.xlu0 %v309, 12
      %v806 = vpop.permute.xlu0 %805
      %807 = vrot.lane.b32.xlu0 %v310, 12
      %v808 = vpop.permute.xlu0 %807
      %809 = vrot.lane.b32.xlu0 %v311, 12
      %v810 = vpop.permute.xlu0 %809
      %811 = vrot.lane.b32.xlu0 %v312, 12
      %v812 = vpop.permute.xlu0 %811
      %813 = vrot.lane.b32.xlu0 %v313, 12
      %v814 = vpop.permute.xlu0 %813
      %815 = vrot.lane.b32.xlu0 %v314, 12
      %v816 = vpop.permute.xlu0 %815
      %817 = vrot.lane.b32.xlu0 %v315, 12
      %v818 = vpop.permute.xlu0 %817
      %819 = vrot.lane.b32.xlu0 %v316, 12
      %v820 = vpop.permute.xlu0 %819
      %821 = vrot.lane.b32.xlu0 %v317, 12
      %v822 = vpop.permute.xlu0 %821
      %823 = vrot.lane.b32.xlu0 %v318, 12
      %v824 = vpop.permute.xlu0 %823
      %825 = vrot.lane.b32.xlu0 %v319, 12
      %v826 = vpop.permute.xlu0 %825
      %827 = vrot.lane.b32.xlu0 %v320, 12
      %v828 = vpop.permute.xlu0 %827
      %829 = vrot.lane.b32.xlu0 %v321, 12
      %v830 = vpop.permute.xlu0 %829
      %831 = vrot.lane.b32.xlu0 %v322, 12
      %v832 = vpop.permute.xlu0 %831
      %833 = vrot.lane.b32.xlu0 %v323, 12
      %v834 = vpop.permute.xlu0 %833
      %835 = vrot.lane.b32.xlu0 %v324, 12
      %v836 = vpop.permute.xlu0 %835
      %837 = vrot.lane.b32.xlu0 %v325, 12
      %v838 = vpop.permute.xlu0 %837
      %839 = vrot.lane.b32.xlu0 %v326, 12
      %v840 = vpop.permute.xlu0 %839
      %841 = vrot.lane.b32.xlu0 %v327, 12
      %v842 = vpop.permute.xlu0 %841
      %907 = vrot.lane.b32.xlu0 %v328, 16
      %v908 = vpop.permute.xlu0 %907
      %909 = vrot.lane.b32.xlu0 %v329, 16
      %v910 = vpop.permute.xlu0 %909
      %911 = vrot.lane.b32.xlu0 %v330, 16
      %v912 = vpop.permute.xlu0 %911
      %913 = vrot.lane.b32.xlu0 %v331, 16
      %v914 = vpop.permute.xlu0 %913
      %915 = vrot.lane.b32.xlu0 %v332, 16
      %v916 = vpop.permute.xlu0 %915
      %917 = vrot.lane.b32.xlu0 %v333, 16
      %v918 = vpop.permute.xlu0 %917
      %919 = vrot.lane.b32.xlu0 %v334, 16
      %v920 = vpop.permute.xlu0 %919
      %921 = vrot.lane.b32.xlu0 %v335, 16
      %v922 = vpop.permute.xlu0 %921
      %923 = vrot.lane.b32.xlu0 %v336, 16
      %v924 = vpop.permute.xlu0 %923
      %925 = vrot.lane.b32.xlu0 %v337, 16
      %v926 = vpop.permute.xlu0 %925
      %927 = vrot.lane.b32.xlu0 %v338, 16
      %v928 = vpop.permute.xlu0 %927
      %929 = vrot.lane.b32.xlu0 %v339, 16
      %v930 = vpop.permute.xlu0 %929
      %931 = vrot.lane.b32.xlu0 %v340, 16
      %v932 = vpop.permute.xlu0 %931
      %933 = vrot.lane.b32.xlu0 %v341, 16
      %v934 = vpop.permute.xlu0 %933
      %935 = vrot.lane.b32.xlu0 %v342, 16
      %v936 = vpop.permute.xlu0 %935
      %937 = vrot.lane.b32.xlu0 %v343, 16
      %v938 = vpop.permute.xlu0 %937
      %939 = vrot.lane.b32.xlu0 %v344, 16
      %v940 = vpop.permute.xlu0 %939
      %941 = vrot.lane.b32.xlu0 %v345, 16
      %v942 = vpop.permute.xlu0 %941
      %943 = vrot.lane.b32.xlu0 %v346, 16
      %v944 = vpop.permute.xlu0 %943
      %945 = vrot.lane.b32.xlu0 %v347, 16
      %v946 = vpop.permute.xlu0 %945
      %947 = vrot.lane.b32.xlu0 %v348, 16
      %v948 = vpop.permute.xlu0 %947
      %949 = vrot.lane.b32.xlu0 %v349, 16
      %v950 = vpop.permute.xlu0 %949
      %951 = vrot.lane.b32.xlu0 %v350, 16
      %v952 = vpop.permute.xlu0 %951
      %953 = vrot.lane.b32.xlu0 %v351, 16
      %v954 = vpop.permute.xlu0 %953
      %955 = vrot.lane.b32.xlu0 %v352, 16
      %v956 = vpop.permute.xlu0 %955
      %957 = vrot.lane.b32.xlu0 %v353, 16
      %v958 = vpop.permute.xlu0 %957
      %959 = vrot.lane.b32.xlu0 %v354, 16
      %v960 = vpop.permute.xlu0 %959
      %961 = vrot.lane.b32.xlu0 %v355, 16
      %v962 = vpop.permute.xlu0 %961
      %963 = vrot.lane.b32.xlu0 %v356, 16
      %v964 = vpop.permute.xlu0 %963
      %965 = vrot.lane.b32.xlu0 %v357, 16
      %v966 = vpop.permute.xlu0 %965
      %967 = vrot.lane.b32.xlu0 %v358, 16
      %v968 = vpop.permute.xlu0 %967
      %969 = vrot.lane.b32.xlu0 %v359, 16
      %v970 = vpop.permute.xlu0 %969
      %1035 = vrot.lane.b32.xlu0 %v360, 20
      %v1036 = vpop.permute.xlu0 %1035
      %1037 = vrot.lane.b32.xlu0 %v361, 20
      %v1038 = vpop.permute.xlu0 %1037
      %1039 = vrot.lane.b32.xlu0 %v362, 20
      %v1040 = vpop.permute.xlu0 %1039
      %1041 = vrot.lane.b32.xlu0 %v363, 20
      %v1042 = vpop.permute.xlu0 %1041
      %1043 = vrot.lane.b32.xlu0 %v364, 20
      %v1044 = vpop.permute.xlu0 %1043
      %1045 = vrot.lane.b32.xlu0 %v365, 20
      %v1046 = vpop.permute.xlu0 %1045
      %1047 = vrot.lane.b32.xlu0 %v366, 20
      %v1048 = vpop.permute.xlu0 %1047
      %1049 = vrot.lane.b32.xlu0 %v367, 20
      %v1050 = vpop.permute.xlu0 %1049
      %1051 = vrot.lane.b32.xlu0 %v368, 20
      %v1052 = vpop.permute.xlu0 %1051
      %1053 = vrot.lane.b32.xlu0 %v369, 20
      %v1054 = vpop.permute.xlu0 %1053
      %1055 = vrot.lane.b32.xlu0 %v370, 20
      %v1056 = vpop.permute.xlu0 %1055
      %1057 = vrot.lane.b32.xlu0 %v371, 20
      %v1058 = vpop.permute.xlu0 %1057
      %1059 = vrot.lane.b32.xlu0 %v372, 20
      %v1060 = vpop.permute.xlu0 %1059
      %1061 = vrot.lane.b32.xlu0 %v373, 20
      %v1062 = vpop.permute.xlu0 %1061
      %1063 = vrot.lane.b32.xlu0 %v374, 20
      %v1064 = vpop.permute.xlu0 %1063
      %1065 = vrot.lane.b32.xlu0 %v375, 20
      %v1066 = vpop.permute.xlu0 %1065
      %1067 = vrot.lane.b32.xlu0 %v376, 20
      %v1068 = vpop.permute.xlu0 %1067
      %1069 = vrot.lane.b32.xlu0 %v377, 20
      %v1070 = vpop.permute.xlu0 %1069
      %1071 = vrot.lane.b32.xlu0 %v378, 20
      %v1072 = vpop.permute.xlu0 %1071
      %1073 = vrot.lane.b32.xlu0 %v379, 20
      %v1074 = vpop.permute.xlu0 %1073
      %1075 = vrot.lane.b32.xlu0 %v380, 20
      %v1076 = vpop.permute.xlu0 %1075
      %1077 = vrot.lane.b32.xlu0 %v381, 20
      %v1078 = vpop.permute.xlu0 %1077
      %1079 = vrot.lane.b32.xlu0 %v382, 20
      %v1080 = vpop.permute.xlu0 %1079
      %1081 = vrot.lane.b32.xlu0 %v383, 20
      %v1082 = vpop.permute.xlu0 %1081
      %1083 = vrot.lane.b32.xlu0 %v384, 20
      %v1084 = vpop.permute.xlu0 %1083
      %1085 = vrot.lane.b32.xlu0 %v385, 20
      %v1086 = vpop.permute.xlu0 %1085
      %1087 = vrot.lane.b32.xlu0 %v386, 20
      %v1088 = vpop.permute.xlu0 %1087
      %1089 = vrot.lane.b32.xlu0 %v387, 20
      %v1090 = vpop.permute.xlu0 %1089
      %1091 = vrot.lane.b32.xlu0 %v388, 20
      %v1092 = vpop.permute.xlu0 %1091
      %1093 = vrot.lane.b32.xlu0 %v389, 20
      %v1094 = vpop.permute.xlu0 %1093
      %1095 = vrot.lane.b32.xlu0 %v390, 20
      %v1096 = vpop.permute.xlu0 %1095
      %1097 = vrot.lane.b32.xlu0 %v391, 20
      %v1098 = vpop.permute.xlu0 %1097
      %1163 = vrot.lane.b32.xlu0 %v395, 24
      %v1164 = vpop.permute.xlu0 %1163
      %1165 = vrot.lane.b32.xlu0 %v396, 24
      %v1166 = vpop.permute.xlu0 %1165
      %1167 = vrot.lane.b32.xlu0 %v397, 24
      %v1168 = vpop.permute.xlu0 %1167
      %1169 = vrot.lane.b32.xlu0 %v398, 24
      %v1170 = vpop.permute.xlu0 %1169
      %1171 = vrot.lane.b32.xlu0 %v399, 24
      %v1172 = vpop.permute.xlu0 %1171
      %1173 = vrot.lane.b32.xlu0 %v400, 24
      %v1174 = vpop.permute.xlu0 %1173
      %1175 = vrot.lane.b32.xlu0 %v401, 24
      %v1176 = vpop.permute.xlu0 %1175
      %1177 = vrot.lane.b32.xlu0 %v402, 24
      %v1178 = vpop.permute.xlu0 %1177
      %1179 = vrot.lane.b32.xlu0 %v403, 24
      %v1180 = vpop.permute.xlu0 %1179
      %1181 = vrot.lane.b32.xlu0 %v404, 24
      %v1182 = vpop.permute.xlu0 %1181
      %1183 = vrot.lane.b32.xlu0 %v405, 24
      %v1184 = vpop.permute.xlu0 %1183
      %1185 = vrot.lane.b32.xlu0 %v406, 24
      %v1186 = vpop.permute.xlu0 %1185
      %1187 = vrot.lane.b32.xlu0 %v407, 24
      %v1188 = vpop.permute.xlu0 %1187
      %1189 = vrot.lane.b32.xlu0 %v408, 24
      %v1190 = vpop.permute.xlu0 %1189
      %1191 = vrot.lane.b32.xlu0 %v409, 24
      %v1192 = vpop.permute.xlu0 %1191
      %1193 = vrot.lane.b32.xlu0 %v410, 24
      %v1194 = vpop.permute.xlu0 %1193
      %1195 = vrot.lane.b32.xlu0 %v411, 24
      %v1196 = vpop.permute.xlu0 %1195
      %1197 = vrot.lane.b32.xlu0 %v412, 24
      %v1198 = vpop.permute.xlu0 %1197
      %1199 = vrot.lane.b32.xlu0 %v413, 24
      %v1200 = vpop.permute.xlu0 %1199
      %1201 = vrot.lane.b32.xlu0 %v414, 24
      %v1202 = vpop.permute.xlu0 %1201
      %1203 = vrot.lane.b32.xlu0 %v415, 24
      %v1204 = vpop.permute.xlu0 %1203
      %1205 = vrot.lane.b32.xlu0 %v416, 24
      %v1206 = vpop.permute.xlu0 %1205
      %1207 = vrot.lane.b32.xlu0 %v417, 24
      %v1208 = vpop.permute.xlu0 %1207
      %1209 = vrot.lane.b32.xlu0 %v418, 24
      %v1210 = vpop.permute.xlu0 %1209
      %1211 = vrot.lane.b32.xlu0 %v419, 24
      %v1212 = vpop.permute.xlu0 %1211
      %1213 = vrot.lane.b32.xlu0 %v420, 24
      %v1214 = vpop.permute.xlu0 %1213
      %1215 = vrot.lane.b32.xlu0 %v421, 24
      %v1216 = vpop.permute.xlu0 %1215
      %1217 = vrot.lane.b32.xlu0 %v422, 24
      %v1218 = vpop.permute.xlu0 %1217
      %1219 = vrot.lane.b32.xlu0 %v423, 24
      %v1220 = vpop.permute.xlu0 %1219
      %1221 = vrot.lane.b32.xlu0 %v424, 24
      %v1222 = vpop.permute.xlu0 %1221
      %1223 = vrot.lane.b32.xlu0 %v425, 24
      %v1224 = vpop.permute.xlu0 %1223
      %1225 = vrot.lane.b32.xlu0 %v426, 24
      %v1226 = vpop.permute.xlu0 %1225
      %1291 = vrot.lane.b32.xlu0 %v427, 28
      %v1292 = vpop.permute.xlu0 %1291
      %1293 = vrot.lane.b32.xlu0 %v428, 28
      %v1294 = vpop.permute.xlu0 %1293
      %1295 = vrot.lane.b32.xlu0 %v429, 28
      %v1296 = vpop.permute.xlu0 %1295
      %1297 = vrot.lane.b32.xlu0 %v430, 28
      %v1298 = vpop.permute.xlu0 %1297
      %1299 = vrot.lane.b32.xlu0 %v431, 28
      %v1300 = vpop.permute.xlu0 %1299
      %1301 = vrot.lane.b32.xlu0 %v432, 28
      %v1302 = vpop.permute.xlu0 %1301
      %1303 = vrot.lane.b32.xlu0 %v433, 28
      %v1304 = vpop.permute.xlu0 %1303
      %1305 = vrot.lane.b32.xlu0 %v434, 28
      %v1306 = vpop.permute.xlu0 %1305
      %1307 = vrot.lane.b32.xlu0 %v435, 28
      %v1308 = vpop.permute.xlu0 %1307
      %1309 = vrot.lane.b32.xlu0 %v436, 28
      %v1310 = vpop.permute.xlu0 %1309
      %1311 = vrot.lane.b32.xlu0 %v437, 28
      %v1312 = vpop.permute.xlu0 %1311
      %1313 = vrot.lane.b32.xlu0 %v438, 28
      %v1314 = vpop.permute.xlu0 %1313
      %1315 = vrot.lane.b32.xlu0 %v439, 28
      %v1316 = vpop.permute.xlu0 %1315
      %1317 = vrot.lane.b32.xlu0 %v440, 28
      %v1318 = vpop.permute.xlu0 %1317
      %1319 = vrot.lane.b32.xlu0 %v441, 28
      %v1320 = vpop.permute.xlu0 %1319
      %1321 = vrot.lane.b32.xlu0 %v442, 28
      %v1322 = vpop.permute.xlu0 %1321
      %1323 = vrot.lane.b32.xlu0 %v443, 28
      %v1324 = vpop.permute.xlu0 %1323
      %1325 = vrot.lane.b32.xlu0 %v444, 28
      %v1326 = vpop.permute.xlu0 %1325
      %1327 = vrot.lane.b32.xlu0 %v445, 28
      %v1328 = vpop.permute.xlu0 %1327
      %1329 = vrot.lane.b32.xlu0 %v446, 28
      %v1330 = vpop.permute.xlu0 %1329
      %1331 = vrot.lane.b32.xlu0 %v447, 28
      %v1332 = vpop.permute.xlu0 %1331
      %1333 = vrot.lane.b32.xlu0 %v448, 28
      %v1334 = vpop.permute.xlu0 %1333
      %1335 = vrot.lane.b32.xlu0 %v449, 28
      %v1336 = vpop.permute.xlu0 %1335
      %1337 = vrot.lane.b32.xlu0 %v450, 28
      %v1338 = vpop.permute.xlu0 %1337
      %1339 = vrot.lane.b32.xlu0 %v451, 28
      %v1340 = vpop.permute.xlu0 %1339
      %1341 = vrot.lane.b32.xlu0 %v452, 28
      %v1342 = vpop.permute.xlu0 %1341
      %1343 = vrot.lane.b32.xlu0 %v453, 28
      %v1344 = vpop.permute.xlu0 %1343
      %1345 = vrot.lane.b32.xlu0 %v454, 28
      %v1346 = vpop.permute.xlu0 %1345
      %1347 = vrot.lane.b32.xlu0 %v455, 28
      %v1348 = vpop.permute.xlu0 %1347
      %1349 = vrot.lane.b32.xlu0 %v456, 28
      %v1350 = vpop.permute.xlu0 %1349
      %1351 = vrot.lane.b32.xlu0 %v457, 28
      %v1352 = vpop.permute.xlu0 %1351
      %1353 = vrot.lane.b32.xlu0 %v458, 28
      %v1354 = vpop.permute.xlu0 %1353
      %1419 = vrot.lane.b32.xlu0 %v459, 32
      %v1420 = vpop.permute.xlu0 %1419
      %1421 = vrot.lane.b32.xlu0 %v460, 32
      %v1422 = vpop.permute.xlu0 %1421
      %1423 = vrot.lane.b32.xlu0 %v461, 32
      %v1424 = vpop.permute.xlu0 %1423
      %1425 = vrot.lane.b32.xlu0 %v462, 32
      %v1426 = vpop.permute.xlu0 %1425
      %1427 = vrot.lane.b32.xlu0 %v463, 32
      %v1428 = vpop.permute.xlu0 %1427
      %1429 = vrot.lane.b32.xlu0 %v464, 32
      %v1430 = vpop.permute.xlu0 %1429
      %1431 = vrot.lane.b32.xlu0 %v465, 32
      %v1432 = vpop.permute.xlu0 %1431
      %1433 = vrot.lane.b32.xlu0 %v466, 32
      %v1434 = vpop.permute.xlu0 %1433
      %1435 = vrot.lane.b32.xlu0 %v467, 32
      %v1436 = vpop.permute.xlu0 %1435
      %1437 = vrot.lane.b32.xlu0 %v468, 32
      %v1438 = vpop.permute.xlu0 %1437
      %1439 = vrot.lane.b32.xlu0 %v469, 32
      %v1440 = vpop.permute.xlu0 %1439
      %1441 = vrot.lane.b32.xlu0 %v470, 32
      %v1442 = vpop.permute.xlu0 %1441
      %1443 = vrot.lane.b32.xlu0 %v471, 32
      %v1444 = vpop.permute.xlu0 %1443
      %1445 = vrot.lane.b32.xlu0 %v472, 32
      %v1446 = vpop.permute.xlu0 %1445
      %1447 = vrot.lane.b32.xlu0 %v473, 32
      %v1448 = vpop.permute.xlu0 %1447
      %1449 = vrot.lane.b32.xlu0 %v474, 32
      %v1450 = vpop.permute.xlu0 %1449
      %1451 = vrot.lane.b32.xlu0 %v475, 32
      %v1452 = vpop.permute.xlu0 %1451
      %1453 = vrot.lane.b32.xlu0 %v476, 32
      %v1454 = vpop.permute.xlu0 %1453
      %1455 = vrot.lane.b32.xlu0 %v477, 32
      %v1456 = vpop.permute.xlu0 %1455
      %1457 = vrot.lane.b32.xlu0 %v478, 32
      %v1458 = vpop.permute.xlu0 %1457
      %1459 = vrot.lane.b32.xlu0 %v479, 32
      %v1460 = vpop.permute.xlu0 %1459
      %1461 = vrot.lane.b32.xlu0 %v480, 32
      %v1462 = vpop.permute.xlu0 %1461
      %1463 = vrot.lane.b32.xlu0 %v481, 32
      %v1464 = vpop.permute.xlu0 %1463
      %1465 = vrot.lane.b32.xlu0 %v482, 32
      %v1466 = vpop.permute.xlu0 %1465
      %1467 = vrot.lane.b32.xlu0 %v483, 32
      %v1468 = vpop.permute.xlu0 %1467
      %1469 = vrot.lane.b32.xlu0 %v484, 32
      %v1470 = vpop.permute.xlu0 %1469
      %1471 = vrot.lane.b32.xlu0 %v485, 32
      %v1472 = vpop.permute.xlu0 %1471
      %1473 = vrot.lane.b32.xlu0 %v486, 32
      %v1474 = vpop.permute.xlu0 %1473
      %1475 = vrot.lane.b32.xlu0 %v487, 32
      %v1476 = vpop.permute.xlu0 %1475
      %1477 = vrot.lane.b32.xlu0 %v488, 32
      %v1478 = vpop.permute.xlu0 %1477
      %1479 = vrot.lane.b32.xlu0 %v489, 32
      %v1480 = vpop.permute.xlu0 %1479
      %1481 = vrot.lane.b32.xlu0 %v490, 32
      %v1482 = vpop.permute.xlu0 %1481
      %vm1515 = vcmask 31744
      %v1516 = vsel %vm1515, %v197, %v524
      %v1517 = vsel %vm1515, %v198, %v526
      %v1518 = vsel %vm1515, %v199, %v528
      %v1519 = vsel %vm1515, %v200, %v530
      %v1520 = vsel %vm1515, %v201, %v532
      %v1521 = vsel %vm1515, %v202, %v534
      %v1522 = vsel %vm1515, %v203, %v536
      %v1523 = vsel %vm1515, %v204, %v538
      %v1524 = vsel %vm1515, %v205, %v540
      %v1525 = vsel %vm1515, %v206, %v542
      %v1526 = vsel %vm1515, %v207, %v544
      %v1527 = vsel %vm1515, %v208, %v546
      %v1528 = vsel %vm1515, %v209, %v548
      %v1529 = vsel %vm1515, %v210, %v550
      %v1530 = vsel %vm1515, %v211, %v552
      %v1531 = vsel %vm1515, %v212, %v554
      %v1532 = vsel %vm1515, %v213, %v556
      %v1533 = vsel %vm1515, %v214, %v558
      %v1534 = vsel %vm1515, %v215, %v560
      %v1535 = vsel %vm1515, %v216, %v562
      %v1536 = vsel %vm1515, %v217, %v564
      %v1537 = vsel %vm1515, %v218, %v566
      %v1538 = vsel %vm1515, %v219, %v568
      %v1539 = vsel %vm1515, %v220, %v570
      %v1540 = vsel %vm1515, %v221, %v572
      %v1541 = vsel %vm1515, %v222, %v574
      %v1542 = vsel %vm1515, %v223, %v576
      %v1543 = vsel %vm1515, %v224, %v578
      %v1544 = vsel %vm1515, %v225, %v580
      %v1545 = vsel %vm1515, %v226, %v582
      %v1546 = vsel %vm1515, %v227, %v584
      %v1547 = vsel %vm1515, %v228, %v586
      %vm1548 = vcmask 64512
      %v1549 = vsel %vm1548, %v1516, %v652
      %v1550 = vsel %vm1548, %v1517, %v654
      %v1551 = vsel %vm1548, %v1518, %v656
      %v1552 = vsel %vm1548, %v1519, %v658
      %v1553 = vsel %vm1548, %v1520, %v660
      %v1554 = vsel %vm1548, %v1521, %v662
      %v1555 = vsel %vm1548, %v1522, %v664
      %v1556 = vsel %vm1548, %v1523, %v666
      %v1557 = vsel %vm1548, %v1524, %v668
      %v1558 = vsel %vm1548, %v1525, %v670
      %v1559 = vsel %vm1548, %v1526, %v672
      %v1560 = vsel %vm1548, %v1527, %v674
      %v1561 = vsel %vm1548, %v1528, %v676
      %v1562 = vsel %vm1548, %v1529, %v678
      %v1563 = vsel %vm1548, %v1530, %v680
      %v1564 = vsel %vm1548, %v1531, %v682
      %v1565 = vsel %vm1548, %v1532, %v684
      %v1566 = vsel %vm1548, %v1533, %v686
      %v1567 = vsel %vm1548, %v1534, %v688
      %v1568 = vsel %vm1548, %v1535, %v690
      %v1569 = vsel %vm1548, %v1536, %v692
      %v1570 = vsel %vm1548, %v1537, %v694
      %v1571 = vsel %vm1548, %v1538, %v696
      %v1572 = vsel %vm1548, %v1539, %v698
      %v1573 = vsel %vm1548, %v1540, %v700
      %v1574 = vsel %vm1548, %v1541, %v702
      %v1575 = vsel %vm1548, %v1542, %v704
      %v1576 = vsel %vm1548, %v1543, %v706
      %v1577 = vsel %vm1548, %v1544, %v708
      %v1578 = vsel %vm1548, %v1545, %v710
      %v1579 = vsel %vm1548, %v1546, %v712
      %v1580 = vsel %vm1548, %v1547, %v714
      %vm1581 = vcmask 97280
      %v1582 = vsel %vm1581, %v1549, %v780
      %v1583 = vsel %vm1581, %v1550, %v782
      %v1584 = vsel %vm1581, %v1551, %v784
      %v1585 = vsel %vm1581, %v1552, %v786
      %v1586 = vsel %vm1581, %v1553, %v788
      %v1587 = vsel %vm1581, %v1554, %v790
      %v1588 = vsel %vm1581, %v1555, %v792
      %v1589 = vsel %vm1581, %v1556, %v794
      %v1590 = vsel %vm1581, %v1557, %v796
      %v1591 = vsel %vm1581, %v1558, %v798
      %v1592 = vsel %vm1581, %v1559, %v800
      %v1593 = vsel %vm1581, %v1560, %v802
      %v1594 = vsel %vm1581, %v1561, %v804
      %v1595 = vsel %vm1581, %v1562, %v806
      %v1596 = vsel %vm1581, %v1563, %v808
      %v1597 = vsel %vm1581, %v1564, %v810
      %v1598 = vsel %vm1581, %v1565, %v812
      %v1599 = vsel %vm1581, %v1566, %v814
      %v1600 = vsel %vm1581, %v1567, %v816
      %v1601 = vsel %vm1581, %v1568, %v818
      %v1602 = vsel %vm1581, %v1569, %v820
      %v1603 = vsel %vm1581, %v1570, %v822
      %v1604 = vsel %vm1581, %v1571, %v824
      %v1605 = vsel %vm1581, %v1572, %v826
      %v1606 = vsel %vm1581, %v1573, %v828
      %v1607 = vsel %vm1581, %v1574, %v830
      %v1608 = vsel %vm1581, %v1575, %v832
      %v1609 = vsel %vm1581, %v1576, %v834
      %v1610 = vsel %vm1581, %v1577, %v836
      %v1611 = vsel %vm1581, %v1578, %v838
      %v1612 = vsel %vm1581, %v1579, %v840
      %v1613 = vsel %vm1581, %v1580, %v842
      %vm1614 = vcmask 130048
      %v1615 = vsel %vm1614, %v1582, %v908
      %v1616 = vsel %vm1614, %v1583, %v910
      %v1617 = vsel %vm1614, %v1584, %v912
      %v1618 = vsel %vm1614, %v1585, %v914
      %v1619 = vsel %vm1614, %v1586, %v916
      %v1620 = vsel %vm1614, %v1587, %v918
      %v1621 = vsel %vm1614, %v1588, %v920
      %v1622 = vsel %vm1614, %v1589, %v922
      %v1623 = vsel %vm1614, %v1590, %v924
      %v1624 = vsel %vm1614, %v1591, %v926
      %v1625 = vsel %vm1614, %v1592, %v928
      %v1626 = vsel %vm1614, %v1593, %v930
      %v1627 = vsel %vm1614, %v1594, %v932
      %v1628 = vsel %vm1614, %v1595, %v934
      %v1629 = vsel %vm1614, %v1596, %v936
      %v1630 = vsel %vm1614, %v1597, %v938
      %v1631 = vsel %vm1614, %v1598, %v940
      %v1632 = vsel %vm1614, %v1599, %v942
      %v1633 = vsel %vm1614, %v1600, %v944
      %v1634 = vsel %vm1614, %v1601, %v946
      %v1635 = vsel %vm1614, %v1602, %v948
      %v1636 = vsel %vm1614, %v1603, %v950
      %v1637 = vsel %vm1614, %v1604, %v952
      %v1638 = vsel %vm1614, %v1605, %v954
      %v1639 = vsel %vm1614, %v1606, %v956
      %v1640 = vsel %vm1614, %v1607, %v958
      %v1641 = vsel %vm1614, %v1608, %v960
      %v1642 = vsel %vm1614, %v1609, %v962
      %v1643 = vsel %vm1614, %v1610, %v964
      %v1644 = vsel %vm1614, %v1611, %v966
      %v1645 = vsel %vm1614, %v1612, %v968
      %v1646 = vsel %vm1614, %v1613, %v970
      %vm1647 = vcmask 162816
      %v1648 = vsel %vm1647, %v1615, %v1036
      %v1649 = vsel %vm1647, %v1616, %v1038
      %v1650 = vsel %vm1647, %v1617, %v1040
      %v1651 = vsel %vm1647, %v1618, %v1042
      %v1652 = vsel %vm1647, %v1619, %v1044
      %v1653 = vsel %vm1647, %v1620, %v1046
      %v1654 = vsel %vm1647, %v1621, %v1048
      %v1655 = vsel %vm1647, %v1622, %v1050
      %v1656 = vsel %vm1647, %v1623, %v1052
      %v1657 = vsel %vm1647, %v1624, %v1054
      %v1658 = vsel %vm1647, %v1625, %v1056
      %v1659 = vsel %vm1647, %v1626, %v1058
      %v1660 = vsel %vm1647, %v1627, %v1060
      %v1661 = vsel %vm1647, %v1628, %v1062
      %v1662 = vsel %vm1647, %v1629, %v1064
      %v1663 = vsel %vm1647, %v1630, %v1066
      %v1664 = vsel %vm1647, %v1631, %v1068
      %v1665 = vsel %vm1647, %v1632, %v1070
      %v1666 = vsel %vm1647, %v1633, %v1072
      %v1667 = vsel %vm1647, %v1634, %v1074
      %v1668 = vsel %vm1647, %v1635, %v1076
      %v1669 = vsel %vm1647, %v1636, %v1078
      %v1670 = vsel %vm1647, %v1637, %v1080
      %v1671 = vsel %vm1647, %v1638, %v1082
      %v1672 = vsel %vm1647, %v1639, %v1084
      %v1673 = vsel %vm1647, %v1640, %v1086
      %v1674 = vsel %vm1647, %v1641, %v1088
      %v1675 = vsel %vm1647, %v1642, %v1090
      %v1676 = vsel %vm1647, %v1643, %v1092
      %v1677 = vsel %vm1647, %v1644, %v1094
      %v1678 = vsel %vm1647, %v1645, %v1096
      %v1679 = vsel %vm1647, %v1646, %v1098
      %vm1680 = vcmask 195584
      %v1681 = vsel %vm1680, %v1648, %v1164
      %v1682 = vsel %vm1680, %v1649, %v1166
      %v1683 = vsel %vm1680, %v1650, %v1168
      %v1684 = vsel %vm1680, %v1651, %v1170
      %v1685 = vsel %vm1680, %v1652, %v1172
      %v1686 = vsel %vm1680, %v1653, %v1174
      %v1687 = vsel %vm1680, %v1654, %v1176
      %v1688 = vsel %vm1680, %v1655, %v1178
      %v1689 = vsel %vm1680, %v1656, %v1180
      %v1690 = vsel %vm1680, %v1657, %v1182
      %v1691 = vsel %vm1680, %v1658, %v1184
      %v1692 = vsel %vm1680, %v1659, %v1186
      %v1693 = vsel %vm1680, %v1660, %v1188
      %v1694 = vsel %vm1680, %v1661, %v1190
      %v1695 = vsel %vm1680, %v1662, %v1192
      %v1696 = vsel %vm1680, %v1663, %v1194
      %v1697 = vsel %vm1680, %v1664, %v1196
      %v1698 = vsel %vm1680, %v1665, %v1198
      %v1699 = vsel %vm1680, %v1666, %v1200
      %v1700 = vsel %vm1680, %v1667, %v1202
      %v1701 = vsel %vm1680, %v1668, %v1204
      %v1702 = vsel %vm1680, %v1669, %v1206
      %v1703 = vsel %vm1680, %v1670, %v1208
      %v1704 = vsel %vm1680, %v1671, %v1210
      %v1705 = vsel %vm1680, %v1672, %v1212
      %v1706 = vsel %vm1680, %v1673, %v1214
      %v1707 = vsel %vm1680, %v1674, %v1216
      %v1708 = vsel %vm1680, %v1675, %v1218
      %v1709 = vsel %vm1680, %v1676, %v1220
      %v1710 = vsel %vm1680, %v1677, %v1222
      %v1711 = vsel %vm1680, %v1678, %v1224
      %v1712 = vsel %vm1680, %v1679, %v1226
      %vm1713 = vcmask 228352
      %v1714 = vsel %vm1713, %v1681, %v1292
      %v1715 = vsel %vm1713, %v1682, %v1294
      %v1716 = vsel %vm1713, %v1683, %v1296
      %v1717 = vsel %vm1713, %v1684, %v1298
      %v1718 = vsel %vm1713, %v1685, %v1300
      %v1719 = vsel %vm1713, %v1686, %v1302
      %v1720 = vsel %vm1713, %v1687, %v1304
      %v1721 = vsel %vm1713, %v1688, %v1306
      %v1722 = vsel %vm1713, %v1689, %v1308
      %v1723 = vsel %vm1713, %v1690, %v1310
      %v1724 = vsel %vm1713, %v1691, %v1312
      %v1725 = vsel %vm1713, %v1692, %v1314
      %v1726 = vsel %vm1713, %v1693, %v1316
      %v1727 = vsel %vm1713, %v1694, %v1318
      %v1728 = vsel %vm1713, %v1695, %v1320
      %v1729 = vsel %vm1713, %v1696, %v1322
      %v1730 = vsel %vm1713, %v1697, %v1324
      %v1731 = vsel %vm1713, %v1698, %v1326
      %v1732 = vsel %vm1713, %v1699, %v1328
      %v1733 = vsel %vm1713, %v1700, %v1330
      %v1734 = vsel %vm1713, %v1701, %v1332
      %v1735 = vsel %vm1713, %v1702, %v1334
      %v1736 = vsel %vm1713, %v1703, %v1336
      %v1737 = vsel %vm1713, %v1704, %v1338
      %v1738 = vsel %vm1713, %v1705, %v1340
      %v1739 = vsel %vm1713, %v1706, %v1342
      %v1740 = vsel %vm1713, %v1707, %v1344
      %v1741 = vsel %vm1713, %v1708, %v1346
      %v1742 = vsel %vm1713, %v1709, %v1348
      %v1743 = vsel %vm1713, %v1710, %v1350
      %v1744 = vsel %vm1713, %v1711, %v1352
      %v1745 = vsel %vm1713, %v1712, %v1354
      %vm1746 = vcmask 261120
      %v1747 = vsel %vm1746, %v1714, %v1420
      %v1748 = vsel %vm1746, %v1715, %v1422
      %v1749 = vsel %vm1746, %v1716, %v1424
      %v1750 = vsel %vm1746, %v1717, %v1426
      %v1751 = vsel %vm1746, %v1718, %v1428
      %v1752 = vsel %vm1746, %v1719, %v1430
      %v1753 = vsel %vm1746, %v1720, %v1432
      %v1754 = vsel %vm1746, %v1721, %v1434
      %v1755 = vsel %vm1746, %v1722, %v1436
      %v1756 = vsel %vm1746, %v1723, %v1438
      %v1757 = vsel %vm1746, %v1724, %v1440
      %v1758 = vsel %vm1746, %v1725, %v1442
      %v1759 = vsel %vm1746, %v1726, %v1444
      %v1760 = vsel %vm1746, %v1727, %v1446
      %v1761 = vsel %vm1746, %v1728, %v1448
      %v1762 = vsel %vm1746, %v1729, %v1450
      %v1763 = vsel %vm1746, %v1730, %v1452
      %v1764 = vsel %vm1746, %v1731, %v1454
      %v1765 = vsel %vm1746, %v1732, %v1456
      %v1766 = vsel %vm1746, %v1733, %v1458
      %v1767 = vsel %vm1746, %v1734, %v1460
      %v1768 = vsel %vm1746, %v1735, %v1462
      %v1769 = vsel %vm1746, %v1736, %v1464
      %v1770 = vsel %vm1746, %v1737, %v1466
      %v1771 = vsel %vm1746, %v1738, %v1468
      %v1772 = vsel %vm1746, %v1739, %v1470
      %v1773 = vsel %vm1746, %v1740, %v1472
      %v1774 = vsel %vm1746, %v1741, %v1474
      %v1775 = vsel %vm1746, %v1742, %v1476
      %v1776 = vsel %vm1746, %v1743, %v1478
      %v1777 = vsel %vm1746, %v1744, %v1480
      %v1778 = vsel %vm1746, %v1745, %v1482
      %v1779 = vld [vmem:[%s1] sm:$0xff]
      %v1780 = vld [vmem:[%s1 + $0x8] sm:$0xff]
      %v1781 = vld [vmem:[%s1 + $0x10] sm:$0xff]
      %v1782 = vld [vmem:[%s1 + $0x18] sm:$0xff]
      %v1783 = vld [vmem:[%s1 + $0x20] sm:$0xf]
      %v1784 = vld [vmem:[%s2] sm:$0x1]
      %v1786 = vperm.slane %v1784, 0
      %vm1788 = vcmask 293888
      %v1790 = vsel %vm1788, %v1747, 0
      %v1793 = vsel %vm1788, %v1748, 0
      %v1796 = vsel %vm1788, %v1749, 0
      %v1799 = vsel %vm1788, %v1750, 0
      %v1802 = vsel %vm1788, %v1751, 0
      %v1805 = vsel %vm1788, %v1752, 0
      %v1808 = vsel %vm1788, %v1753, 0
      %v1811 = vsel %vm1788, %v1754, 0
      %v1814 = vsel %vm1788, %v1755, 0
      %v1817 = vsel %vm1788, %v1756, 0
      %v1820 = vsel %vm1788, %v1757, 0
      %v1823 = vsel %vm1788, %v1758, 0
      %v1826 = vsel %vm1788, %v1759, 0
      %v1829 = vsel %vm1788, %v1760, 0
      %v1832 = vsel %vm1788, %v1761, 0
      %v1835 = vsel %vm1788, %v1762, 0
      %v1838 = vsel %vm1788, %v1763, 0
      %v1841 = vsel %vm1788, %v1764, 0
      %v1844 = vsel %vm1788, %v1765, 0
      %v1847 = vsel %vm1788, %v1766, 0
      %v1850 = vsel %vm1788, %v1767, 0
      %v1853 = vsel %vm1788, %v1768, 0
      %v1856 = vsel %vm1788, %v1769, 0
      %v1859 = vsel %vm1788, %v1770, 0
      %v1862 = vsel %vm1788, %v1771, 0
      %v1865 = vsel %vm1788, %v1772, 0
      %v1868 = vsel %vm1788, %v1773, 0
      %v1871 = vsel %vm1788, %v1774, 0
      %v1874 = vsel %vm1788, %v1775, 0
      %v1877 = vsel %vm1788, %v1776, 0
      %v1880 = vsel %vm1788, %v1777, 0
      %v1883 = vsel %vm1788, %v1778, 0
      %vm1885 = vcmask 1043456
      %v1887 = vsel %vm1885, %v1783, 0
      %1889 = vmatpush.msra.mxu0 0.0
      %1890 = vmatpush.msra.mxu0 0.0
      %1891 = vmatpush.msra.mxu0 0.0
      %1892 = vmatpush.msra.mxu0 0.0
      %1893 = vmatpush.msra.mxu0 0.0
      %1894 = vmatpush.msra.mxu0 0.0
      %1895 = vmatpush.msra.mxu0 0.0
      %1896 = vmatpush.msra.mxu0 0.0
      %1897 = vmatpush.msra.mxu0 0.0
      %1898 = vmatpush.msra.mxu0 0.0
      %1899 = vmatpush.msra.mxu0 0.0
      %1900 = vmatpush.msra.mxu0 %v1887
      %1901 = vmatpush.msra.mxu0 %v1782
      %1902 = vmatpush.msra.mxu0 %v1781
      %1903 = vmatpush.msra.mxu0 %v1780
      %1904 = vmatpush.msra.mxu0 %v1779
      %1905 = vmatmul.f32.gmra.mxu0 %v1790
      %v1906 = vpop.f32.mrf.mxu0
      %v1907 = vadd.f32 %v1786, %v1906
      %1908 = vmatmul.f32.gmra.mxu0 %v1793
      %v1909 = vpop.f32.mrf.mxu0
      %v1910 = vadd.f32 %v1786, %v1909
      %1911 = vmatmul.f32.gmra.mxu0 %v1796
      %v1912 = vpop.f32.mrf.mxu0
      %v1913 = vadd.f32 %v1786, %v1912
      %1914 = vmatmul.f32.gmra.mxu0 %v1799
      %v1915 = vpop.f32.mrf.mxu0
      %v1916 = vadd.f32 %v1786, %v1915
      %1917 = vmatmul.f32.gmra.mxu0 %v1802
      %v1918 = vpop.f32.mrf.mxu0
      %v1919 = vadd.f32 %v1786, %v1918
      %1920 = vmatmul.f32.gmra.mxu0 %v1805
      %v1921 = vpop.f32.mrf.mxu0
      %v1922 = vadd.f32 %v1786, %v1921
      %1923 = vmatmul.f32.gmra.mxu0 %v1808
      %v1924 = vpop.f32.mrf.mxu0
      %v1925 = vadd.f32 %v1786, %v1924
      %1926 = vmatmul.f32.gmra.mxu0 %v1811
      %v1927 = vpop.f32.mrf.mxu0
      %v1928 = vadd.f32 %v1786, %v1927
      %1929 = vmatmul.f32.gmra.mxu0 %v1814
      %v1930 = vpop.f32.mrf.mxu0
      %v1931 = vadd.f32 %v1786, %v1930
      %1932 = vmatmul.f32.gmra.mxu0 %v1817
      %v1933 = vpop.f32.mrf.mxu0
      %v1934 = vadd.f32 %v1786, %v1933
      %1935 = vmatmul.f32.gmra.mxu0 %v1820
      %v1936 = vpop.f32.mrf.mxu0
      %v1937 = vadd.f32 %v1786, %v1936
      %1938 = vmatmul.f32.gmra.mxu0 %v1823
      %v1939 = vpop.f32.mrf.mxu0
      %v1940 = vadd.f32 %v1786, %v1939
      %1941 = vmatmul.f32.gmra.mxu0 %v1826
      %v1942 = vpop.f32.mrf.mxu0
      %v1943 = vadd.f32 %v1786, %v1942
      %1944 = vmatmul.f32.gmra.mxu0 %v1829
      %v1945 = vpop.f32.mrf.mxu0
      %v1946 = vadd.f32 %v1786, %v1945
      %1947 = vmatmul.f32.gmra.mxu0 %v1832
      %v1948 = vpop.f32.mrf.mxu0
      %v1949 = vadd.f32 %v1786, %v1948
      %1950 = vmatmul.f32.gmra.mxu0 %v1835
      %v1951 = vpop.f32.mrf.mxu0
      %v1952 = vadd.f32 %v1786, %v1951
      %1953 = vmatmul.f32.gmra.mxu0 %v1838
      %v1954 = vpop.f32.mrf.mxu0
      %v1955 = vadd.f32 %v1786, %v1954
      %1956 = vmatmul.f32.gmra.mxu0 %v1841
      %v1957 = vpop.f32.mrf.mxu0
      %v1958 = vadd.f32 %v1786, %v1957
      %1959 = vmatmul.f32.gmra.mxu0 %v1844
      %v1960 = vpop.f32.mrf.mxu0
      %v1961 = vadd.f32 %v1786, %v1960
      %1962 = vmatmul.f32.gmra.mxu0 %v1847
      %v1963 = vpop.f32.mrf.mxu0
      %v1964 = vadd.f32 %v1786, %v1963
      %1965 = vmatmul.f32.gmra.mxu0 %v1850
      %v1966 = vpop.f32.mrf.mxu0
      %v1967 = vadd.f32 %v1786, %v1966
      %1968 = vmatmul.f32.gmra.mxu0 %v1853
      %v1969 = vpop.f32.mrf.mxu0
      %v1970 = vadd.f32 %v1786, %v1969
      %1971 = vmatmul.f32.gmra.mxu0 %v1856
      %v1972 = vpop.f32.mrf.mxu0
      %v1973 = vadd.f32 %v1786, %v1972
      %1974 = vmatmul.f32.gmra.mxu0 %v1859
      %v1975 = vpop.f32.mrf.mxu0
      %v1976 = vadd.f32 %v1786, %v1975
      %1977 = vmatmul.f32.gmra.mxu0 %v1862
      %v1978 = vpop.f32.mrf.mxu0
      %v1979 = vadd.f32 %v1786, %v1978
      %1980 = vmatmul.f32.gmra.mxu0 %v1865
      %v1981 = vpop.f32.mrf.mxu0
      %v1982 = vadd.f32 %v1786, %v1981
      %1983 = vmatmul.f32.gmra.mxu0 %v1868
      %v1984 = vpop.f32.mrf.mxu0
      %v1985 = vadd.f32 %v1786, %v1984
      %1986 = vmatmul.f32.gmra.mxu0 %v1871
      %v1987 = vpop.f32.mrf.mxu0
      %v1988 = vadd.f32 %v1786, %v1987
      %1989 = vmatmul.f32.gmra.mxu0 %v1874
      %v1990 = vpop.f32.mrf.mxu0
      %v1991 = vadd.f32 %v1786, %v1990
      %1992 = vmatmul.f32.gmra.mxu0 %v1877
      %v1993 = vpop.f32.mrf.mxu0
      %v1994 = vadd.f32 %v1786, %v1993
      %1995 = vmatmul.f32.gmra.mxu0 %v1880
      %v1996 = vpop.f32.mrf.mxu0
      %v1997 = vadd.f32 %v1786, %v1996
      %1998 = vmatmul.f32.gmra.mxu0 %v1883
      %v1999 = vpop.f32.mrf.mxu0
      %v2000 = vadd.f32 %v1786, %v1999
      %2001 = vdwg.mxu0
      %2002 = vst.msk [vmem:[%s192] sm:$0xff] %vm1614, %v1907
      %2003 = vst.msk [vmem:[%s192 + $0x8] sm:$0xff] %vm1614, %v1910
      %2004 = vst.msk [vmem:[%s192 + $0x10] sm:$0xff] %vm1614, %v1913
      %2005 = vst.msk [vmem:[%s192 + $0x18] sm:$0xff] %vm1614, %v1916
      %2006 = vst.msk [vmem:[%s192 + $0x20] sm:$0xff] %vm1614, %v1919
      %2007 = vst.msk [vmem:[%s192 + $0x28] sm:$0xff] %vm1614, %v1922
      %2008 = vst.msk [vmem:[%s192 + $0x30] sm:$0xff] %vm1614, %v1925
      %2009 = vst.msk [vmem:[%s192 + $0x38] sm:$0xff] %vm1614, %v1928
      %2010 = vst.msk [vmem:[%s192 + $0x40] sm:$0xff] %vm1614, %v1931
      %2011 = vst.msk [vmem:[%s192 + $0x48] sm:$0xff] %vm1614, %v1934
      %2012 = vst.msk [vmem:[%s192 + $0x50] sm:$0xff] %vm1614, %v1937
      %2013 = vst.msk [vmem:[%s192 + $0x58] sm:$0xff] %vm1614, %v1940
      %2014 = vst.msk [vmem:[%s192 + $0x60] sm:$0xff] %vm1614, %v1943
      %2015 = vst.msk [vmem:[%s192 + $0x68] sm:$0xff] %vm1614, %v1946
      %2016 = vst.msk [vmem:[%s192 + $0x70] sm:$0xff] %vm1614, %v1949
      %2017 = vst.msk [vmem:[%s192 + $0x78] sm:$0xff] %vm1614, %v1952
      %2018 = vst.msk [vmem:[%s192 + $0x80] sm:$0xff] %vm1614, %v1955
      %2019 = vst.msk [vmem:[%s192 + $0x88] sm:$0xff] %vm1614, %v1958
      %2020 = vst.msk [vmem:[%s192 + $0x90] sm:$0xff] %vm1614, %v1961
      %2021 = vst.msk [vmem:[%s192 + $0x98] sm:$0xff] %vm1614, %v1964
      %2022 = vst.msk [vmem:[%s192 + $0xa0] sm:$0xff] %vm1614, %v1967
      %2023 = vst.msk [vmem:[%s192 + $0xa8] sm:$0xff] %vm1614, %v1970
      %2024 = vst.msk [vmem:[%s192 + $0xb0] sm:$0xff] %vm1614, %v1973
      %2025 = vst.msk [vmem:[%s192 + $0xb8] sm:$0xff] %vm1614, %v1976
      %2026 = vst.msk [vmem:[%s192 + $0xc0] sm:$0xff] %vm1614, %v1979
      %2027 = vst.msk [vmem:[%s192 + $0xc8] sm:$0xff] %vm1614, %v1982
      %2028 = vst.msk [vmem:[%s192 + $0xd0] sm:$0xff] %vm1614, %v1985
      %2029 = vst.msk [vmem:[%s192 + $0xd8] sm:$0xff] %vm1614, %v1988
      %2030 = vst.msk [vmem:[%s192 + $0xe0] sm:$0xff] %vm1614, %v1991
      %2031 = vst.msk [vmem:[%s192 + $0xe8] sm:$0xff] %vm1614, %v1994
      %2032 = vst.msk [vmem:[%s192 + $0xf0] sm:$0xff] %vm1614, %v1997
      %2033 = vst.msk [vmem:[%s192 + $0xf8] sm:$0xff] %vm1614, %v2000
      %s2034 = smul.u32 32, %s19
      %p2035 = scmp.lt.s32.totalorder %s18, 1
      %s2036 = scalar_select %p2035, %s18, 1
      %p2037 = scmp.lt.s32.totalorder %s2034, 31
      %s2038 = scalar_select %p2037, %s2034, 31
      %s2039 = smul.addr %s2036, 32
      %s2040 = sadd.s32 %s2038, %s2039
      %s2041 = smul.addr %s2040, 8
      %s2042 = scalar_lea.vmem %s3, %s2041
      // Predicated region
      $region33: #{upsample.1} parent=31 // pred_check
        %p2043 = pneg %p114
      $region34: #{upsample.1} parent=31 // pred_check_branch
        %2045 = sbr.rel (%p2043) target = $region36
      $region35: #{upsample.1} parent=31 // pred_region
        %s2046 = smul.u32 32, %s19
      $region36: #{upsample.1} parent=31 // pred_fallthru
        _
    $region32: #{upsample.1} parent=5 // pred_fallthru
      _
    %p2047 = scmp.le.s32.totalorder 2, %s9
    // Predicated region
    $region37: #{upsample.1} parent=5 // pred_check
      %p2048 = pneg %p2047
    $region38: #{upsample.1} parent=5 // pred_check_branch
      %2050 = sbr.rel (%p2048) target = $region40
    $region39: #{upsample.1} parent=5 // pred_region
      %s2051 = ssub.s32 %s9, 2
      // Predicated region
      $region41: #{upsample.1} parent=39 // pred_check
        %p2052 = pneg %p120
      $region42: #{upsample.1} parent=39 // pred_check_branch
        %2054 = sbr.rel (%p2052) target = $region44
      $region43: #{upsample.1} parent=39 // pred_region
        %s2055 = smul.u32 32, %s21
        %p2056 = scmp.lt.s32.totalorder %s20, 1
        %s2057 = scalar_select %p2056, %s20, 1
        %p2058 = scmp.lt.s32.totalorder %s2055, 31
        %s2059 = scalar_select %p2058, %s2055, 31
        %s2060 = smul.addr %s2057, 32
        %s2061 = sadd.s32 %s2059, %s2060
        %s2062 = smul.addr %s2061, 8
        %s2063 = scalar_lea.vmem %s3, %s2062
      $region44: #{upsample.1} parent=39 // pred_fallthru
        _
    $region40: #{upsample.1} parent=5 // pred_fallthru
      _
  $region6: #{upsample.1} parent=0 // loop_footer
    %s13 = sadd.s32 1, %s9
  $region7: #{upsample.1} parent=0 // loop_footer_branch
    %8 = sbr.rel target = $region3
  $region8: #{upsample.1} parent=0 // loop_exit
    _

</llo_original>
